<compile_context>
chip_gen: v7x
topology: tpu7x:2x2x1
jax: 0.10.0
libtpu: 0.0.40
codegen_flags: <defaults>
</compile_context>

<pallas_src>
import functools

import jax
import jax.numpy as jnp
from jax.experimental import pallas as pl
from jax.experimental.pallas import tpu as pltpu


def _bn_add_kernel(x_ref, r_ref, gb_ref, o_ref, *, eps, inv_l):
    # x_ref/r_ref/o_ref: (TC, L)   gb_ref: (2, TC) -> row 0 = gamma, row 1 = beta
    x = x_ref[...].astype(jnp.float32)
    r = r_ref[...].astype(jnp.float32)

    # One pass over the data for statistics: sum and sum-of-squares.
    # (Biased variance -> matches PyTorch training-mode normalization.)
    s1 = jnp.sum(x, axis=1, keepdims=True)
    s2 = jnp.sum(x * x, axis=1, keepdims=True)
    mean = s1 * inv_l
    var = jnp.maximum(s2 * inv_l - mean * mean, 0.0)
    inv_std = jax.lax.rsqrt(var + eps)

    # Lane-dense (1, TC) rows, transposed to (TC, 1) on the XLU (compute slots
    # are nowhere near binding here).
    g = jnp.transpose(gb_ref[0:1, :].astype(jnp.float32))   # (TC, 1)
    b = jnp.transpose(gb_ref[1:2, :].astype(jnp.float32))   # (TC, 1)

    scale = inv_std * g                      # (TC, 1)
    shift = b - mean * scale                 # (TC, 1)
    o_ref[...] = (x * scale + shift + r).astype(o_ref.dtype)


def _pick_tile_c(C):
    """Generation-aware channel tile.

    v7x has 2 TensorCores: use 256 so each core gets >=2 grid steps and the
    BlockSpec pipeline can prefetch/writeback under compute. v5e/v6e: 512
    (2 large steps, lowest per-step overhead tax on a bandwidth-bound kernel).
    """
    try:
        kind = jax.devices()[0].device_kind.lower()
    except Exception:  # pragma: no cover - conservative fallback
        kind = ""
    tile_c = 256 if "7" in kind else 512
    if tile_c > C or C % tile_c != 0:
        tile_c = C
    return tile_c


def batchnorm_add(x, residual, gamma, beta, *, eps=1e-5, tile_c=None):
    N, C, H, W = x.shape
    L = N * H * W

    if tile_c is None:
        tile_c = _pick_tile_c(C)
    if tile_c > C or C % tile_c != 0:
        tile_c = C
    grid = (C // tile_c,)

    # NCHW -> (C, N*H*W). For N == 1 these are free layout views.
    x2 = jnp.transpose(x, (1, 0, 2, 3)).reshape(C, L)
    r2 = jnp.transpose(residual, (1, 0, 2, 3)).reshape(C, L)
    # Lane-dense packing: (2, C), one contiguous DMA stream per step.
    gb = jnp.stack([gamma, beta], axis=0).astype(x.dtype)  # (2, C)

    elem_bytes = jnp.dtype(x.dtype).itemsize
    cost = pl.CostEstimate(
        flops=5 * C * L,
        transcendentals=C,
        bytes_accessed=3 * C * L * elem_bytes + 2 * C * elem_bytes,
    )

    out2 = pl.pallas_call(
        functools.partial(_bn_add_kernel, eps=eps, inv_l=1.0 / L),
        out_shape=jax.ShapeDtypeStruct((C, L), x.dtype),
        grid=grid,
        in_specs=[
            pl.BlockSpec((tile_c, L), lambda i: (i, 0)),
            pl.BlockSpec((tile_c, L), lambda i: (i, 0)),
            pl.BlockSpec((2, tile_c), lambda i: (0, i)),
        ],
        out_specs=pl.BlockSpec((tile_c, L), lambda i: (i, 0)),
        compiler_params=pltpu.CompilerParams(dimension_semantics=("parallel",)),
        cost_estimate=cost,
    )(x2, r2, gb)

    # (C, N*H*W) -> NCHW
    return jnp.transpose(out2.reshape(C, N, H, W), (1, 0, 2, 3))


def _reference(x, residual, gamma, beta, eps=1e-5):
    mean = jnp.mean(x, axis=(0, 2, 3), keepdims=True)
    var = jnp.mean((x - mean) ** 2, axis=(0, 2, 3), keepdims=True)
    xhat = (x - mean) * jax.lax.rsqrt(var + eps)
    y = xhat * gamma[None, :, None, None] + beta[None, :, None, None]
    return y + residual


if __name__ == "__main__":
    key = jax.random.PRNGKey(0)
    k1, k2, k3, k4 = jax.random.split(key, 4)

    N, C, H, W = 1, 1024, 14, 14  # shapes implied by the module
    x167 = jax.random.normal(k1, (N, C, H, W), dtype=jnp.float32)
    x160 = jax.random.normal(k2, (N, C, H, W), dtype=jnp.float32)

    # Affine parameters (PyTorch default init is ones/zeros; small random
    # values exercise the affine path).
    gamma = 1.0 + 0.1 * jax.random.normal(k3, (C,), dtype=jnp.float32)
    beta = 0.1 * jax.random.normal(k4, (C,), dtype=jnp.float32)

    out = batchnorm_add(x167, x160, gamma, beta)
    out = jax.block_until_ready(out)

    ref = _reference(x167, x160, gamma, beta)
    assert out.shape == (N, C, H, W)
    assert jnp.allclose(out, ref, atol=1e-4, rtol=1e-4)

    print("KERNEL_OK")
</pallas_src>

<mosaic_0001>
module attributes {stable_mosaic.version = 11 : i64} {
  func.func @_bn_add_kernel(%arg0: i32, %arg1: memref<512x196xf32, #tpu.memory_space<vmem>>, %arg2: memref<512x196xf32, #tpu.memory_space<vmem>>, %arg3: memref<2x512xf32, #tpu.memory_space<vmem>>, %arg4: memref<512x196xf32, #tpu.memory_space<vmem>>) attributes {dimension_semantics = [#tpu.dimension_semantics<parallel>], iteration_bounds = array<i64: 2>, scalar_prefetch = 0 : i64, scratch_operands = 0 : i64, tpu.core_type = #tpu.core_type<tc>, window_params = [{transform_indices = @transform_0, window_bounds = array<i64: 512, 196>}, {transform_indices = @transform_1, window_bounds = array<i64: 512, 196>}, {transform_indices = @transform_2, window_bounds = array<i64: 2, 512>}, {transform_indices = @transform_3, window_bounds = array<i64: 512, 196>}]} {
    %c0 = arith.constant 0 : index
    %c0_0 = arith.constant 0 : index
    %0 = vector.load %arg1[%c0, %c0_0] : memref<512x196xf32, #tpu.memory_space<vmem>>, vector<512x196xf32>
    %c0_1 = arith.constant 0 : index
    %c0_2 = arith.constant 0 : index
    %1 = vector.load %arg2[%c0_1, %c0_2] : memref<512x196xf32, #tpu.memory_space<vmem>>, vector<512x196xf32>
    %cst = arith.constant dense<0.000000e+00> : vector<512xf32>
    %2 = vector.multi_reduction <add>, %0, %cst [1] : vector<512x196xf32> to vector<512xf32>
    %3 = vector.shape_cast %2 : vector<512xf32> to vector<512x1xf32>
    %4 = arith.mulf %0, %0 : vector<512x196xf32>
    %cst_3 = arith.constant dense<0.000000e+00> : vector<512xf32>
    %5 = vector.multi_reduction <add>, %4, %cst_3 [1] : vector<512x196xf32> to vector<512xf32>
    %6 = vector.shape_cast %5 : vector<512xf32> to vector<512x1xf32>
    %cst_4 = arith.constant 0.00510204071 : f32
    %7 = vector.broadcast %cst_4 : f32 to vector<512x1xf32>
    %8 = arith.mulf %3, %7 : vector<512x1xf32>
    %cst_5 = arith.constant 0.00510204071 : f32
    %9 = vector.broadcast %cst_5 : f32 to vector<512x1xf32>
    %10 = arith.mulf %6, %9 : vector<512x1xf32>
    %11 = arith.mulf %8, %8 : vector<512x1xf32>
    %12 = arith.subf %10, %11 : vector<512x1xf32>
    %cst_6 = arith.constant 0.000000e+00 : f32
    %13 = vector.broadcast %cst_6 : f32 to vector<512x1xf32>
    %14 = arith.maximumf %12, %13 : vector<512x1xf32>
    %cst_7 = arith.constant 9.99999974E-6 : f32
    %15 = vector.broadcast %cst_7 : f32 to vector<512x1xf32>
    %16 = arith.addf %14, %15 : vector<512x1xf32>
    %17 = math.rsqrt %16 : vector<512x1xf32>
    %c0_8 = arith.constant 0 : index
    %c0_9 = arith.constant 0 : index
    %18 = vector.load %arg3[%c0_8, %c0_9] : memref<2x512xf32, #tpu.memory_space<vmem>>, vector<1x512xf32>
    %19 = tpu.transpose %18, [1, 0] : vector<1x512xf32> -> vector<512x1xf32>
    %c1 = arith.constant 1 : index
    %c0_10 = arith.constant 0 : index
    %20 = vector.load %arg3[%c1, %c0_10] : memref<2x512xf32, #tpu.memory_space<vmem>>, vector<1x512xf32>
    %21 = tpu.transpose %20, [1, 0] : vector<1x512xf32> -> vector<512x1xf32>
    %22 = arith.mulf %17, %19 : vector<512x1xf32>
    %23 = arith.mulf %8, %22 : vector<512x1xf32>
    %24 = arith.subf %21, %23 : vector<512x1xf32>
    %25 = vector.broadcast %22 : vector<512x1xf32> to vector<512x196xf32>
    %26 = arith.mulf %0, %25 : vector<512x196xf32>
    %27 = vector.broadcast %24 : vector<512x1xf32> to vector<512x196xf32>
    %28 = arith.addf %26, %27 : vector<512x196xf32>
    %29 = arith.addf %28, %1 : vector<512x196xf32>
    %c0_11 = arith.constant 0 : index
    %c0_12 = arith.constant 0 : index
    %30 = vector.load %arg4[%c0_11, %c0_12] : memref<512x196xf32, #tpu.memory_space<vmem>>, vector<512x196xf32>
    tpu.vector_store %arg4[%c0_11, %c0_12], %29 {strides = array<i32>} : memref<512x196xf32, #tpu.memory_space<vmem>>, vector<512x196xf32>,
    return
  }
  func.func @transform_0(%arg0: i32) -> (i32, i32) {
    %c0_i32 = arith.constant 0 : i32
    %c0_i32_0 = arith.constant 0 : i32
    return %arg0, %c0_i32 : i32, i32
  }
  func.func @transform_1(%arg0: i32) -> (i32, i32) {
    %c0_i32 = arith.constant 0 : i32
    %c0_i32_0 = arith.constant 0 : i32
    return %arg0, %c0_i32 : i32, i32
  }
  func.func @transform_2(%arg0: i32) -> (i32, i32) {
    %c0_i32 = arith.constant 0 : i32
    %c0_i32_0 = arith.constant 0 : i32
    return %c0_i32, %arg0 : i32, i32
  }
  func.func @transform_3(%arg0: i32) -> (i32, i32) {
    %c0_i32 = arith.constant 0 : i32
    %c0_i32_0 = arith.constant 0 : i32
    return %arg0, %c0_i32 : i32, i32
  }
}

</mosaic_0001>

<llo_original>
// kernel: tpu_custom_call.1
$region0: #{tpu_custom_call.1}
  #allocation0 [shape = 'u32[]', space=smem, size = 0x4, offset = 0x4, fixed_abs, tag = 'smem constant byte address 0x4 - core index']
  #allocation1 [shape = 'u32[144,128]{1,0:T(1,128)}', space=vmem, size = 0x12000, scoped, tag = 'internal scratch']
  %s0 = inlined_call_operand.vmem [shape: f32[1024,196], index: 0, kind: input, shape index: {}]
  %s1 = inlined_call_operand.vmem [shape: f32[1024,196], index: 1, kind: input, shape index: {}]
  %s2 = inlined_call_operand.vmem [shape: f32[2,1024], index: 2, kind: input, shape index: {}]
  %s3 = inlined_call_operand.vmem [shape: f32[1024,196], index: 3, kind: output, shape index: {}]
  %s4 = sld [smem:[#allocation0]]
  $region45: #{tpu_custom_call.1} parent=0
    _
  %s6 = ssub.s32 1, %s4
  %s7 = scalar_select 0, %s6, %s4
  loop: start=0, step=1, limit=4
  $region2: #{tpu_custom_call.1} parent=0 // loop_pre_header
    _
  $region3: #{tpu_custom_call.1} parent=0 // loop_header
    %s9 = sphi 0, %s13
    %p10 = scmp.ge.s32.totalorder %s9, 4
    %s19 = sphi 0, %s21
    %s22 = sphi 0, %s19
    %s23 = sphi 0, %s22
    %s39 = sphi 0, %s23
    %s45 = sphi 0, %s47
    %s48 = sphi 0, %s45
    %s49 = sphi 0, %s48
    %s65 = sphi 0, %s49
    %s71 = sphi 0, %s73
    %s74 = sphi 0, %s71
    %s75 = sphi 0, %s74
    %s91 = sphi 0, %s75
    %s97 = sphi 0, %s99
    %s100 = sphi 0, %s97
    %s101 = sphi 0, %s100
    %s117 = sphi 0, %s101
  $region4: #{tpu_custom_call.1} parent=0 // loop_header_branch
    %12 = sbr.rel (%p10) target = $region8
  $region5: #{tpu_custom_call.1} parent=0 // loop_body
    %s14 = ssub.s32 %s9, 1
    %s15 = ssub.s32 %s9, 2
    %s16 = sadd.s32 %s9, 1
    %s17 = ssub.s32 %s9, %s16
    %p18 = scmp.eq.s32.totalorder %s17, 0
    %s20 = sadd.s32 %s19, 1
    %s21 = scalar_select %p18, %s19, %s20
    %p24 = pneg %p18
    %p25 = scmp.eq.s32.totalorder %s9, 1
    %p26 = por %p24, %p25
    %p27 = scmp.ne.s32.totalorder %s19, %s22
    %p28 = scmp.eq.s32.totalorder %s9, 0
    %p29 = por %p27, %p28
    %p30 = scmp.ne.s32.totalorder %s19, %s22
    %p31 = scmp.eq.s32.totalorder %s14, 1
    %p32 = por %p30, %p31
    %p33 = scmp.ne.s32.totalorder %s22, %s23
    %p34 = scmp.eq.s32.totalorder %s14, 0
    %p35 = por %p33, %p34
    %p36 = scmp.ne.s32.totalorder %s22, %s23
    %p37 = scmp.eq.s32.totalorder %s15, 1
    %p38 = por %p36, %p37
    %p40 = scmp.ne.s32.totalorder %s23, %s39
    %p41 = scmp.eq.s32.totalorder %s15, 0
    %p42 = por %p40, %p41
    %s43 = ssub.s32 %s9, %s16
    %p44 = scmp.eq.s32.totalorder %s43, 0
    %s46 = sadd.s32 %s45, 1
    %s47 = scalar_select %p44, %s45, %s46
    %p50 = pneg %p44
    %p51 = scmp.eq.s32.totalorder %s9, 1
    %p52 = por %p50, %p51
    %p53 = scmp.ne.s32.totalorder %s45, %s48
    %p54 = scmp.eq.s32.totalorder %s9, 0
    %p55 = por %p53, %p54
    %p56 = scmp.ne.s32.totalorder %s45, %s48
    %p57 = scmp.eq.s32.totalorder %s14, 1
    %p58 = por %p56, %p57
    %p59 = scmp.ne.s32.totalorder %s48, %s49
    %p60 = scmp.eq.s32.totalorder %s14, 0
    %p61 = por %p59, %p60
    %p62 = scmp.ne.s32.totalorder %s48, %s49
    %p63 = scmp.eq.s32.totalorder %s15, 1
    %p64 = por %p62, %p63
    %p66 = scmp.ne.s32.totalorder %s49, %s65
    %p67 = scmp.eq.s32.totalorder %s15, 0
    %p68 = por %p66, %p67
    %s69 = ssub.s32 %s9, %s16
    %p70 = scmp.eq.s32.totalorder %s69, 0
    %s72 = sadd.s32 %s71, 1
    %s73 = scalar_select %p70, %s71, %s72
    %p76 = pneg %p70
    %p77 = scmp.eq.s32.totalorder %s9, 1
    %p78 = por %p76, %p77
    %p79 = scmp.ne.s32.totalorder %s71, %s74
    %p80 = scmp.eq.s32.totalorder %s9, 0
    %p81 = por %p79, %p80
    %p82 = scmp.ne.s32.totalorder %s71, %s74
    %p83 = scmp.eq.s32.totalorder %s14, 1
    %p84 = por %p82, %p83
    %p85 = scmp.ne.s32.totalorder %s74, %s75
    %p86 = scmp.eq.s32.totalorder %s14, 0
    %p87 = por %p85, %p86
    %p88 = scmp.ne.s32.totalorder %s74, %s75
    %p89 = scmp.eq.s32.totalorder %s15, 1
    %p90 = por %p88, %p89
    %p92 = scmp.ne.s32.totalorder %s75, %s91
    %p93 = scmp.eq.s32.totalorder %s15, 0
    %p94 = por %p92, %p93
    %s95 = ssub.s32 %s9, %s16
    %p96 = scmp.eq.s32.totalorder %s95, 0
    %s98 = sadd.s32 %s97, 1
    %s99 = scalar_select %p96, %s97, %s98
    %p102 = pneg %p96
    %p103 = scmp.eq.s32.totalorder %s9, 1
    %p104 = por %p102, %p103
    %p105 = scmp.ne.s32.totalorder %s97, %s100
    %p106 = scmp.eq.s32.totalorder %s9, 0
    %p107 = por %p105, %p106
    %p108 = scmp.ne.s32.totalorder %s97, %s100
    %p109 = scmp.eq.s32.totalorder %s14, 1
    %p110 = por %p108, %p109
    %p111 = scmp.ne.s32.totalorder %s100, %s101
    %p112 = scmp.eq.s32.totalorder %s14, 0
    %p113 = por %p111, %p112
    %p114 = scmp.ne.s32.totalorder %s100, %s101
    %p115 = scmp.eq.s32.totalorder %s15, 1
    %p116 = por %p114, %p115
    %p118 = scmp.ne.s32.totalorder %s101, %s117
    %p119 = scmp.eq.s32.totalorder %s15, 0
    %p120 = por %p118, %p119
    %p121 = scmp.le.s32.totalorder 1, %s9
    %p122 = scmp.lt.s32.totalorder %s9, 3
    %p123 = pnand %p121, %p122
    %p124 = pneg %p123
    // Predicated region
    $region9: #{tpu_custom_call.1} parent=5 // pred_check
      _
    $region10: #{tpu_custom_call.1} parent=5 // pred_check_branch
      %126 = sbr.rel (%p123) target = $region12
    $region11: #{tpu_custom_call.1} parent=5 // pred_region
      %s127 = ssub.s32 %s9, 1
    $region12: #{tpu_custom_call.1} parent=5 // pred_fallthru
      _
    %p128 = scmp.lt.s32.totalorder %s9, 2
    // Predicated region
    $region13: #{tpu_custom_call.1} parent=5 // pred_check
      %p129 = pneg %p128
    $region14: #{tpu_custom_call.1} parent=5 // pred_check_branch
      %131 = sbr.rel (%p129) target = $region16
    $region15: #{tpu_custom_call.1} parent=5 // pred_region
      // Predicated region
      $region17: #{tpu_custom_call.1} parent=15 // pred_check
        %p132 = pneg %p29
      $region18: #{tpu_custom_call.1} parent=15 // pred_check_branch
        %134 = sbr.rel (%p132) target = $region20
      $region19: #{tpu_custom_call.1} parent=15 // pred_region
        %s135 = smul.u32 64, %s9
        %p136 = scmp.lt.s32.totalorder %s135, 127
        %s137 = scalar_select %p136, %s135, 127
        %s138 = smul.addr %s137, 2
        %s139 = smul.addr %s138, 8
        %s140 = scalar_lea.vmem %s0, %s139
        %s141 = smul.u32 64, %s9
      $region20: #{tpu_custom_call.1} parent=15 // pred_fallthru
        _
      // Predicated region
      $region21: #{tpu_custom_call.1} parent=15 // pred_check
        %p142 = pneg %p55
      $region22: #{tpu_custom_call.1} parent=15 // pred_check_branch
        %144 = sbr.rel (%p142) target = $region24
      $region23: #{tpu_custom_call.1} parent=15 // pred_region
        %s145 = smul.u32 64, %s9
        %p146 = scmp.lt.s32.totalorder %s145, 127
        %s147 = scalar_select %p146, %s145, 127
        %s148 = smul.addr %s147, 2
        %s149 = smul.addr %s148, 8
        %s150 = scalar_lea.vmem %s1, %s149
        %s151 = smul.u32 64, %s9
      $region24: #{tpu_custom_call.1} parent=15 // pred_fallthru
        _
      // Predicated region
      $region25: #{tpu_custom_call.1} parent=15 // pred_check
        %p152 = pneg %p81
      $region26: #{tpu_custom_call.1} parent=15 // pred_check_branch
        %154 = sbr.rel (%p152) target = $region28
      $region27: #{tpu_custom_call.1} parent=15 // pred_region
        %s155 = smul.u32 4, %s9
        %p156 = scmp.lt.s32.totalorder %s155, 7
        %s157 = scalar_select %p156, %s155, 7
        %s158 = smul.addr %s157, 2
        %s159 = scalar_lea.vmem %s2, %s158
        %s160 = smul.u32 4, %s9
      $region28: #{tpu_custom_call.1} parent=15 // pred_fallthru
        _
    $region16: #{tpu_custom_call.1} parent=5 // pred_fallthru
      _
    %p161 = scmp.le.s32.totalorder 1, %s9
    %p162 = scmp.lt.s32.totalorder %s9, 3
    %p163 = pnand %p161, %p162
    %p164 = pneg %p163
    // Predicated region
    $region29: #{tpu_custom_call.1} parent=5 // pred_check
      _
    $region30: #{tpu_custom_call.1} parent=5 // pred_check_branch
      %166 = sbr.rel (%p163) target = $region32
    $region31: #{tpu_custom_call.1} parent=5 // pred_region
      %s167 = ssub.s32 %s9, 1
      %s168 = smul.u32 64, %s14
      %p169 = scmp.lt.s32.totalorder %s168, 127
      %s170 = scalar_select %p169, %s168, 127
      %s171 = smul.addr %s170, 2
      %s172 = smul.addr %s171, 8
      %s173 = scalar_lea.vmem %s0, %s172
      %p174 = pneg %p35
      %p175 = pneg %p32
      %s176 = smul.u32 64, %s14
      %p177 = scmp.lt.s32.totalorder %s176, 127
      %s178 = scalar_select %p177, %s176, 127
      %s179 = smul.addr %s178, 2
      %s180 = smul.addr %s179, 8
      %s181 = scalar_lea.vmem %s1, %s180
      %p182 = pneg %p61
      %p183 = pneg %p58
      %s184 = smul.u32 4, %s14
      %p185 = scmp.lt.s32.totalorder %s184, 7
      %s186 = scalar_select %p185, %s184, 7
      %s187 = smul.addr %s186, 2
      %s188 = scalar_lea.vmem %s2, %s187
      %p189 = pneg %p87
      %p190 = pneg %p84
      %p191 = pneg %p113
      %p192 = pneg %p110
      %s193 = smul.u32 64, %s14
      %p194 = scmp.lt.s32.totalorder %s193, 127
      %s195 = scalar_select %p194, %s193, 127
      %s196 = smul.addr %s195, 2
      %s197 = smul.addr %s196, 8
      %s198 = scalar_lea.vmem %s3, %s197
      %s199 = smul.u32 64, %s14
      %p200 = scmp.lt.s32.totalorder %s199, 127
      %s201 = scalar_select %p200, %s199, 127
      %s202 = smul.addr %s201, 2
      %s203 = smul.addr %s202, 8
      %s204 = scalar_lea.vmem %s0, %s203
      %s205 = smul.u32 64, %s14
      %s206 = smul.u32 64, %s14
      %p207 = scmp.lt.s32.totalorder %s206, 127
      %s208 = scalar_select %p207, %s206, 127
      %s209 = smul.addr %s208, 2
      %s210 = smul.addr %s209, 8
      %s211 = scalar_lea.vmem %s1, %s210
      %s212 = smul.u32 64, %s14
      %s213 = smul.u32 4, %s14
      %p214 = scmp.lt.s32.totalorder %s213, 7
      %s215 = scalar_select %p214, %s213, 7
      %s216 = smul.addr %s215, 2
      %s217 = scalar_lea.vmem %s2, %s216
      %s218 = smul.u32 4, %s14
      %s219 = smul.u32 64, %s14
      %p220 = scmp.lt.s32.totalorder %s219, 127
      %s221 = scalar_select %p220, %s219, 127
      %s222 = smul.addr %s221, 2
      %s223 = smul.addr %s222, 8
      %s224 = scalar_lea.vmem %s3, %s223
      %s225 = smul.u32 64, %s14
      %v226 = vld [vmem:[%s204] sm:$0xff]
      %v227 = vld [vmem:[%s204 + $0x8] sm:$0xff]
      %v228 = vld [vmem:[%s204 + $0x10] sm:$0xff]
      %v229 = vld [vmem:[%s204 + $0x18] sm:$0xff]
      %v230 = vld [vmem:[%s204 + $0x20] sm:$0xff]
      %v231 = vld [vmem:[%s204 + $0x28] sm:$0xff]
      %v232 = vld [vmem:[%s204 + $0x30] sm:$0xff]
      %v233 = vld [vmem:[%s204 + $0x38] sm:$0xff]
      %v234 = vld [vmem:[%s204 + $0x40] sm:$0xff]
      %v235 = vld [vmem:[%s204 + $0x48] sm:$0xff]
      %v236 = vld [vmem:[%s204 + $0x50] sm:$0xff]
      %v237 = vld [vmem:[%s204 + $0x58] sm:$0xff]
      %v238 = vld [vmem:[%s204 + $0x60] sm:$0xff]
      %v239 = vld [vmem:[%s204 + $0x68] sm:$0xff]
      %v240 = vld [vmem:[%s204 + $0x70] sm:$0xff]
      %v241 = vld [vmem:[%s204 + $0x78] sm:$0xff]
      %v242 = vld [vmem:[%s204 + $0x80] sm:$0xff]
      %v243 = vld [vmem:[%s204 + $0x88] sm:$0xff]
      %v244 = vld [vmem:[%s204 + $0x90] sm:$0xff]
      %v245 = vld [vmem:[%s204 + $0x98] sm:$0xff]
      %v246 = vld [vmem:[%s204 + $0xa0] sm:$0xff]
      %v247 = vld [vmem:[%s204 + $0xa8] sm:$0xff]
      %v248 = vld [vmem:[%s204 + $0xb0] sm:$0xff]
      %v249 = vld [vmem:[%s204 + $0xb8] sm:$0xff]
      %v250 = vld [vmem:[%s204 + $0xc0] sm:$0xff]
      %v251 = vld [vmem:[%s204 + $0xc8] sm:$0xff]
      %v252 = vld [vmem:[%s204 + $0xd0] sm:$0xff]
      %v253 = vld [vmem:[%s204 + $0xd8] sm:$0xff]
      %v254 = vld [vmem:[%s204 + $0xe0] sm:$0xff]
      %v255 = vld [vmem:[%s204 + $0xe8] sm:$0xff]
      %v256 = vld [vmem:[%s204 + $0xf0] sm:$0xff]
      %v257 = vld [vmem:[%s204 + $0xf8] sm:$0xff]
      %v258 = vld [vmem:[%s204 + $0x100] sm:$0xff]
      %v259 = vld [vmem:[%s204 + $0x108] sm:$0xff]
      %v260 = vld [vmem:[%s204 + $0x110] sm:$0xff]
      %v261 = vld [vmem:[%s204 + $0x118] sm:$0xff]
      %v262 = vld [vmem:[%s204 + $0x120] sm:$0xff]
      %v263 = vld [vmem:[%s204 + $0x128] sm:$0xff]
      %v264 = vld [vmem:[%s204 + $0x130] sm:$0xff]
      %v265 = vld [vmem:[%s204 + $0x138] sm:$0xff]
      %v266 = vld [vmem:[%s204 + $0x140] sm:$0xff]
      %v267 = vld [vmem:[%s204 + $0x148] sm:$0xff]
      %v268 = vld [vmem:[%s204 + $0x150] sm:$0xff]
      %v269 = vld [vmem:[%s204 + $0x158] sm:$0xff]
      %v270 = vld [vmem:[%s204 + $0x160] sm:$0xff]
      %v271 = vld [vmem:[%s204 + $0x168] sm:$0xff]
      %v272 = vld [vmem:[%s204 + $0x170] sm:$0xff]
      %v273 = vld [vmem:[%s204 + $0x178] sm:$0xff]
      %v274 = vld [vmem:[%s204 + $0x180] sm:$0xff]
      %v275 = vld [vmem:[%s204 + $0x188] sm:$0xff]
      %v276 = vld [vmem:[%s204 + $0x190] sm:$0xff]
      %v277 = vld [vmem:[%s204 + $0x198] sm:$0xff]
      %v278 = vld [vmem:[%s204 + $0x1a0] sm:$0xff]
      %v279 = vld [vmem:[%s204 + $0x1a8] sm:$0xff]
      %v280 = vld [vmem:[%s204 + $0x1b0] sm:$0xff]
      %v281 = vld [vmem:[%s204 + $0x1b8] sm:$0xff]
      %v282 = vld [vmem:[%s204 + $0x1c0] sm:$0xff]
      %v283 = vld [vmem:[%s204 + $0x1c8] sm:$0xff]
      %v284 = vld [vmem:[%s204 + $0x1d0] sm:$0xff]
      %v285 = vld [vmem:[%s204 + $0x1d8] sm:$0xff]
      %v286 = vld [vmem:[%s204 + $0x1e0] sm:$0xff]
      %v287 = vld [vmem:[%s204 + $0x1e8] sm:$0xff]
      %v288 = vld [vmem:[%s204 + $0x1f0] sm:$0xff]
      %v289 = vld [vmem:[%s204 + $0x1f8] sm:$0xff]
      %v290 = vld [vmem:[%s204 + $0x200] sm:$0xff]
      %v291 = vld [vmem:[%s204 + $0x208] sm:$0xff]
      %v292 = vld [vmem:[%s204 + $0x210] sm:$0xff]
      %v293 = vld [vmem:[%s204 + $0x218] sm:$0xff]
      %v294 = vld [vmem:[%s204 + $0x220] sm:$0xff]
      %v295 = vld [vmem:[%s204 + $0x228] sm:$0xff]
      %v296 = vld [vmem:[%s204 + $0x230] sm:$0xff]
      %v297 = vld [vmem:[%s204 + $0x238] sm:$0xff]
      %v298 = vld [vmem:[%s204 + $0x240] sm:$0xff]
      %v299 = vld [vmem:[%s204 + $0x248] sm:$0xff]
      %v300 = vld [vmem:[%s204 + $0x250] sm:$0xff]
      %v301 = vld [vmem:[%s204 + $0x258] sm:$0xff]
      %v302 = vld [vmem:[%s204 + $0x260] sm:$0xff]
      %v303 = vld [vmem:[%s204 + $0x268] sm:$0xff]
      %v304 = vld [vmem:[%s204 + $0x270] sm:$0xff]
      %v305 = vld [vmem:[%s204 + $0x278] sm:$0xff]
      %v306 = vld [vmem:[%s204 + $0x280] sm:$0xff]
      %v307 = vld [vmem:[%s204 + $0x288] sm:$0xff]
      %v308 = vld [vmem:[%s204 + $0x290] sm:$0xff]
      %v309 = vld [vmem:[%s204 + $0x298] sm:$0xff]
      %v310 = vld [vmem:[%s204 + $0x2a0] sm:$0xff]
      %v311 = vld [vmem:[%s204 + $0x2a8] sm:$0xff]
      %v312 = vld [vmem:[%s204 + $0x2b0] sm:$0xff]
      %v313 = vld [vmem:[%s204 + $0x2b8] sm:$0xff]
      %v314 = vld [vmem:[%s204 + $0x2c0] sm:$0xff]
      %v315 = vld [vmem:[%s204 + $0x2c8] sm:$0xff]
      %v316 = vld [vmem:[%s204 + $0x2d0] sm:$0xff]
      %v317 = vld [vmem:[%s204 + $0x2d8] sm:$0xff]
      %v318 = vld [vmem:[%s204 + $0x2e0] sm:$0xff]
      %v319 = vld [vmem:[%s204 + $0x2e8] sm:$0xff]
      %v320 = vld [vmem:[%s204 + $0x2f0] sm:$0xff]
      %v321 = vld [vmem:[%s204 + $0x2f8] sm:$0xff]
      %v322 = vld [vmem:[%s204 + $0x300] sm:$0xff]
      %v323 = vld [vmem:[%s204 + $0x308] sm:$0xff]
      %v324 = vld [vmem:[%s204 + $0x310] sm:$0xff]
      %v325 = vld [vmem:[%s204 + $0x318] sm:$0xff]
      %v326 = vld [vmem:[%s204 + $0x320] sm:$0xff]
      %v327 = vld [vmem:[%s204 + $0x328] sm:$0xff]
      %v328 = vld [vmem:[%s204 + $0x330] sm:$0xff]
      %v329 = vld [vmem:[%s204 + $0x338] sm:$0xff]
      %v330 = vld [vmem:[%s204 + $0x340] sm:$0xff]
      %v331 = vld [vmem:[%s204 + $0x348] sm:$0xff]
      %v332 = vld [vmem:[%s204 + $0x350] sm:$0xff]
      %v333 = vld [vmem:[%s204 + $0x358] sm:$0xff]
      %v334 = vld [vmem:[%s204 + $0x360] sm:$0xff]
      %v335 = vld [vmem:[%s204 + $0x368] sm:$0xff]
      %v336 = vld [vmem:[%s204 + $0x370] sm:$0xff]
      %v337 = vld [vmem:[%s204 + $0x378] sm:$0xff]
      %v338 = vld [vmem:[%s204 + $0x380] sm:$0xff]
      %v339 = vld [vmem:[%s204 + $0x388] sm:$0xff]
      %v340 = vld [vmem:[%s204 + $0x390] sm:$0xff]
      %v341 = vld [vmem:[%s204 + $0x398] sm:$0xff]
      %v342 = vld [vmem:[%s204 + $0x3a0] sm:$0xff]
      %v343 = vld [vmem:[%s204 + $0x3a8] sm:$0xff]
      %v344 = vld [vmem:[%s204 + $0x3b0] sm:$0xff]
      %v345 = vld [vmem:[%s204 + $0x3b8] sm:$0xff]
      %v346 = vld [vmem:[%s204 + $0x3c0] sm:$0xff]
      %v347 = vld [vmem:[%s204 + $0x3c8] sm:$0xff]
      %v348 = vld [vmem:[%s204 + $0x3d0] sm:$0xff]
      %v349 = vld [vmem:[%s204 + $0x3d8] sm:$0xff]
      %v350 = vld [vmem:[%s204 + $0x3e0] sm:$0xff]
      %v351 = vld [vmem:[%s204 + $0x3e8] sm:$0xff]
      %v352 = vld [vmem:[%s204 + $0x3f0] sm:$0xff]
      %v353 = vld [vmem:[%s204 + $0x3f8] sm:$0xff]
      %v354 = vld [vmem:[%s211] sm:$0xff]
      %v355 = vld [vmem:[%s211 + $0x8] sm:$0xff]
      %v356 = vld [vmem:[%s211 + $0x10] sm:$0xff]
      %v357 = vld [vmem:[%s211 + $0x18] sm:$0xff]
      %v358 = vld [vmem:[%s211 + $0x20] sm:$0xff]
      %v359 = vld [vmem:[%s211 + $0x28] sm:$0xff]
      %v360 = vld [vmem:[%s211 + $0x30] sm:$0xff]
      %v361 = vld [vmem:[%s211 + $0x38] sm:$0xff]
      %v362 = vld [vmem:[%s211 + $0x40] sm:$0xff]
      %v363 = vld [vmem:[%s211 + $0x48] sm:$0xff]
      %v364 = vld [vmem:[%s211 + $0x50] sm:$0xff]
      %v365 = vld [vmem:[%s211 + $0x58] sm:$0xff]
      %v366 = vld [vmem:[%s211 + $0x60] sm:$0xff]
      %v367 = vld [vmem:[%s211 + $0x68] sm:$0xff]
      %v368 = vld [vmem:[%s211 + $0x70] sm:$0xff]
      %v369 = vld [vmem:[%s211 + $0x78] sm:$0xff]
      %v370 = vld [vmem:[%s211 + $0x80] sm:$0xff]
      %v371 = vld [vmem:[%s211 + $0x88] sm:$0xff]
      %v372 = vld [vmem:[%s211 + $0x90] sm:$0xff]
      %v373 = vld [vmem:[%s211 + $0x98] sm:$0xff]
      %v374 = vld [vmem:[%s211 + $0xa0] sm:$0xff]
      %v375 = vld [vmem:[%s211 + $0xa8] sm:$0xff]
      %v376 = vld [vmem:[%s211 + $0xb0] sm:$0xff]
      %v377 = vld [vmem:[%s211 + $0xb8] sm:$0xff]
      %v378 = vld [vmem:[%s211 + $0xc0] sm:$0xff]
      %v379 = vld [vmem:[%s211 + $0xc8] sm:$0xff]
      %v380 = vld [vmem:[%s211 + $0xd0] sm:$0xff]
      %v381 = vld [vmem:[%s211 + $0xd8] sm:$0xff]
      %v382 = vld [vmem:[%s211 + $0xe0] sm:$0xff]
      %v383 = vld [vmem:[%s211 + $0xe8] sm:$0xff]
      %v384 = vld [vmem:[%s211 + $0xf0] sm:$0xff]
      %v385 = vld [vmem:[%s211 + $0xf8] sm:$0xff]
      %v386 = vld [vmem:[%s211 + $0x100] sm:$0xff]
      %v387 = vld [vmem:[%s211 + $0x108] sm:$0xff]
      %v388 = vld [vmem:[%s211 + $0x110] sm:$0xff]
      %v389 = vld [vmem:[%s211 + $0x118] sm:$0xff]
      %v390 = vld [vmem:[%s211 + $0x120] sm:$0xff]
      %v391 = vld [vmem:[%s211 + $0x128] sm:$0xff]
      %v392 = vld [vmem:[%s211 + $0x130] sm:$0xff]
      %v393 = vld [vmem:[%s211 + $0x138] sm:$0xff]
      %v394 = vld [vmem:[%s211 + $0x140] sm:$0xff]
      %v395 = vld [vmem:[%s211 + $0x148] sm:$0xff]
      %v396 = vld [vmem:[%s211 + $0x150] sm:$0xff]
      %v397 = vld [vmem:[%s211 + $0x158] sm:$0xff]
      %v398 = vld [vmem:[%s211 + $0x160] sm:$0xff]
      %v399 = vld [vmem:[%s211 + $0x168] sm:$0xff]
      %v400 = vld [vmem:[%s211 + $0x170] sm:$0xff]
      %v401 = vld [vmem:[%s211 + $0x178] sm:$0xff]
      %v402 = vld [vmem:[%s211 + $0x180] sm:$0xff]
      %v403 = vld [vmem:[%s211 + $0x188] sm:$0xff]
      %v404 = vld [vmem:[%s211 + $0x190] sm:$0xff]
      %v405 = vld [vmem:[%s211 + $0x198] sm:$0xff]
      %v406 = vld [vmem:[%s211 + $0x1a0] sm:$0xff]
      %v407 = vld [vmem:[%s211 + $0x1a8] sm:$0xff]
      %v408 = vld [vmem:[%s211 + $0x1b0] sm:$0xff]
      %v409 = vld [vmem:[%s211 + $0x1b8] sm:$0xff]
      %v410 = vld [vmem:[%s211 + $0x1c0] sm:$0xff]
      %v411 = vld [vmem:[%s211 + $0x1c8] sm:$0xff]
      %v412 = vld [vmem:[%s211 + $0x1d0] sm:$0xff]
      %v413 = vld [vmem:[%s211 + $0x1d8] sm:$0xff]
      %v414 = vld [vmem:[%s211 + $0x1e0] sm:$0xff]
      %v415 = vld [vmem:[%s211 + $0x1e8] sm:$0xff]
      %v416 = vld [vmem:[%s211 + $0x1f0] sm:$0xff]
      %v417 = vld [vmem:[%s211 + $0x1f8] sm:$0xff]
      %v418 = vld [vmem:[%s211 + $0x200] sm:$0xff]
      %v419 = vld [vmem:[%s211 + $0x208] sm:$0xff]
      %v420 = vld [vmem:[%s211 + $0x210] sm:$0xff]
      %v421 = vld [vmem:[%s211 + $0x218] sm:$0xff]
      %v422 = vld [vmem:[%s211 + $0x220] sm:$0xff]
      %v423 = vld [vmem:[%s211 + $0x228] sm:$0xff]
      %v424 = vld [vmem:[%s211 + $0x230] sm:$0xff]
      %v425 = vld [vmem:[%s211 + $0x238] sm:$0xff]
      %v426 = vld [vmem:[%s211 + $0x240] sm:$0xff]
      %v427 = vld [vmem:[%s211 + $0x248] sm:$0xff]
      %v428 = vld [vmem:[%s211 + $0x250] sm:$0xff]
      %v429 = vld [vmem:[%s211 + $0x258] sm:$0xff]
      %v430 = vld [vmem:[%s211 + $0x260] sm:$0xff]
      %v431 = vld [vmem:[%s211 + $0x268] sm:$0xff]
      %v432 = vld [vmem:[%s211 + $0x270] sm:$0xff]
      %v433 = vld [vmem:[%s211 + $0x278] sm:$0xff]
      %v434 = vld [vmem:[%s211 + $0x280] sm:$0xff]
      %v435 = vld [vmem:[%s211 + $0x288] sm:$0xff]
      %v436 = vld [vmem:[%s211 + $0x290] sm:$0xff]
      %v437 = vld [vmem:[%s211 + $0x298] sm:$0xff]
      %v438 = vld [vmem:[%s211 + $0x2a0] sm:$0xff]
      %v439 = vld [vmem:[%s211 + $0x2a8] sm:$0xff]
      %v440 = vld [vmem:[%s211 + $0x2b0] sm:$0xff]
      %v441 = vld [vmem:[%s211 + $0x2b8] sm:$0xff]
      %v442 = vld [vmem:[%s211 + $0x2c0] sm:$0xff]
      %v443 = vld [vmem:[%s211 + $0x2c8] sm:$0xff]
      %v444 = vld [vmem:[%s211 + $0x2d0] sm:$0xff]
      %v445 = vld [vmem:[%s211 + $0x2d8] sm:$0xff]
      %v446 = vld [vmem:[%s211 + $0x2e0] sm:$0xff]
      %v447 = vld [vmem:[%s211 + $0x2e8] sm:$0xff]
      %v448 = vld [vmem:[%s211 + $0x2f0] sm:$0xff]
      %v449 = vld [vmem:[%s211 + $0x2f8] sm:$0xff]
      %v450 = vld [vmem:[%s211 + $0x300] sm:$0xff]
      %v451 = vld [vmem:[%s211 + $0x308] sm:$0xff]
      %v452 = vld [vmem:[%s211 + $0x310] sm:$0xff]
      %v453 = vld [vmem:[%s211 + $0x318] sm:$0xff]
      %v454 = vld [vmem:[%s211 + $0x320] sm:$0xff]
      %v455 = vld [vmem:[%s211 + $0x328] sm:$0xff]
      %v456 = vld [vmem:[%s211 + $0x330] sm:$0xff]
      %v457 = vld [vmem:[%s211 + $0x338] sm:$0xff]
      %v458 = vld [vmem:[%s211 + $0x340] sm:$0xff]
      %v459 = vld [vmem:[%s211 + $0x348] sm:$0xff]
      %v460 = vld [vmem:[%s211 + $0x350] sm:$0xff]
      %v461 = vld [vmem:[%s211 + $0x358] sm:$0xff]
      %v462 = vld [vmem:[%s211 + $0x360] sm:$0xff]
      %v463 = vld [vmem:[%s211 + $0x368] sm:$0xff]
      %v464 = vld [vmem:[%s211 + $0x370] sm:$0xff]
      %v465 = vld [vmem:[%s211 + $0x378] sm:$0xff]
      %v466 = vld [vmem:[%s211 + $0x380] sm:$0xff]
      %v467 = vld [vmem:[%s211 + $0x388] sm:$0xff]
      %v468 = vld [vmem:[%s211 + $0x390] sm:$0xff]
      %v469 = vld [vmem:[%s211 + $0x398] sm:$0xff]
      %v470 = vld [vmem:[%s211 + $0x3a0] sm:$0xff]
      %v471 = vld [vmem:[%s211 + $0x3a8] sm:$0xff]
      %v472 = vld [vmem:[%s211 + $0x3b0] sm:$0xff]
      %v473 = vld [vmem:[%s211 + $0x3b8] sm:$0xff]
      %v474 = vld [vmem:[%s211 + $0x3c0] sm:$0xff]
      %v475 = vld [vmem:[%s211 + $0x3c8] sm:$0xff]
      %v476 = vld [vmem:[%s211 + $0x3d0] sm:$0xff]
      %v477 = vld [vmem:[%s211 + $0x3d8] sm:$0xff]
      %v478 = vld [vmem:[%s211 + $0x3e0] sm:$0xff]
      %v479 = vld [vmem:[%s211 + $0x3e8] sm:$0xff]
      %v480 = vld [vmem:[%s211 + $0x3f0] sm:$0xff]
      %v481 = vld [vmem:[%s211 + $0x3f8] sm:$0xff]
      %vm482 = vcmask 556032
      %v483 = vsel %vm482, %v227, 0.0
      %v484 = vadd.f32 %v226, %v483
      %485 = vadd.xlane.f32.xlu0 %v484
      %v486 = vpop.xlane.xlu0 %485
      %v487 = vsel %vm482, %v229, 0.0
      %v488 = vadd.f32 %v228, %v487
      %489 = vadd.xlane.f32.xlu0 %v488
      %v490 = vpop.xlane.xlu0 %489
      %v491 = vsel %vm482, %v231, 0.0
      %v492 = vadd.f32 %v230, %v491
      %493 = vadd.xlane.f32.xlu0 %v492
      %v494 = vpop.xlane.xlu0 %493
      %v495 = vsel %vm482, %v233, 0.0
      %v496 = vadd.f32 %v232, %v495
      %497 = vadd.xlane.f32.xlu0 %v496
      %v498 = vpop.xlane.xlu0 %497
      %v499 = vsel %vm482, %v235, 0.0
      %v500 = vadd.f32 %v234, %v499
      %501 = vadd.xlane.f32.xlu0 %v500
      %v502 = vpop.xlane.xlu0 %501
      %v503 = vsel %vm482, %v237, 0.0
      %v504 = vadd.f32 %v236, %v503
      %505 = vadd.xlane.f32.xlu0 %v504
      %v506 = vpop.xlane.xlu0 %505
      %v507 = vsel %vm482, %v239, 0.0
      %v508 = vadd.f32 %v238, %v507
      %509 = vadd.xlane.f32.xlu0 %v508
      %v510 = vpop.xlane.xlu0 %509
      %v511 = vsel %vm482, %v241, 0.0
      %v512 = vadd.f32 %v240, %v511
      %513 = vadd.xlane.f32.xlu0 %v512
      %v514 = vpop.xlane.xlu0 %513
      %v515 = vsel %vm482, %v243, 0.0
      %v516 = vadd.f32 %v242, %v515
      %517 = vadd.xlane.f32.xlu0 %v516
      %v518 = vpop.xlane.xlu0 %517
      %v519 = vsel %vm482, %v245, 0.0
      %v520 = vadd.f32 %v244, %v519
      %521 = vadd.xlane.f32.xlu0 %v520
      %v522 = vpop.xlane.xlu0 %521
      %v523 = vsel %vm482, %v247, 0.0
      %v524 = vadd.f32 %v246, %v523
      %525 = vadd.xlane.f32.xlu0 %v524
      %v526 = vpop.xlane.xlu0 %525
      %v527 = vsel %vm482, %v249, 0.0
      %v528 = vadd.f32 %v248, %v527
      %529 = vadd.xlane.f32.xlu0 %v528
      %v530 = vpop.xlane.xlu0 %529
      %v531 = vsel %vm482, %v251, 0.0
      %v532 = vadd.f32 %v250, %v531
      %533 = vadd.xlane.f32.xlu0 %v532
      %v534 = vpop.xlane.xlu0 %533
      %v535 = vsel %vm482, %v253, 0.0
      %v536 = vadd.f32 %v252, %v535
      %537 = vadd.xlane.f32.xlu0 %v536
      %v538 = vpop.xlane.xlu0 %537
      %v539 = vsel %vm482, %v255, 0.0
      %v540 = vadd.f32 %v254, %v539
      %541 = vadd.xlane.f32.xlu0 %v540
      %v542 = vpop.xlane.xlu0 %541
      %v543 = vsel %vm482, %v257, 0.0
      %v544 = vadd.f32 %v256, %v543
      %545 = vadd.xlane.f32.xlu0 %v544
      %v546 = vpop.xlane.xlu0 %545
      %v547 = vsel %vm482, %v259, 0.0
      %v548 = vadd.f32 %v258, %v547
      %549 = vadd.xlane.f32.xlu0 %v548
      %v550 = vpop.xlane.xlu0 %549
      %v551 = vsel %vm482, %v261, 0.0
      %v552 = vadd.f32 %v260, %v551
      %553 = vadd.xlane.f32.xlu0 %v552
      %v554 = vpop.xlane.xlu0 %553
      %v555 = vsel %vm482, %v263, 0.0
      %v556 = vadd.f32 %v262, %v555
      %557 = vadd.xlane.f32.xlu0 %v556
      %v558 = vpop.xlane.xlu0 %557
      %v559 = vsel %vm482, %v265, 0.0
      %v560 = vadd.f32 %v264, %v559
      %561 = vadd.xlane.f32.xlu0 %v560
      %v562 = vpop.xlane.xlu0 %561
      %v563 = vsel %vm482, %v267, 0.0
      %v564 = vadd.f32 %v266, %v563
      %565 = vadd.xlane.f32.xlu0 %v564
      %v566 = vpop.xlane.xlu0 %565
      %v567 = vsel %vm482, %v269, 0.0
      %v568 = vadd.f32 %v268, %v567
      %569 = vadd.xlane.f32.xlu0 %v568
      %v570 = vpop.xlane.xlu0 %569
      %v571 = vsel %vm482, %v271, 0.0
      %v572 = vadd.f32 %v270, %v571
      %573 = vadd.xlane.f32.xlu0 %v572
      %v574 = vpop.xlane.xlu0 %573
      %v575 = vsel %vm482, %v273, 0.0
      %v576 = vadd.f32 %v272, %v575
      %577 = vadd.xlane.f32.xlu0 %v576
      %v578 = vpop.xlane.xlu0 %577
      %v579 = vsel %vm482, %v275, 0.0
      %v580 = vadd.f32 %v274, %v579
      %581 = vadd.xlane.f32.xlu0 %v580
      %v582 = vpop.xlane.xlu0 %581
      %v583 = vsel %vm482, %v277, 0.0
      %v584 = vadd.f32 %v276, %v583
      %585 = vadd.xlane.f32.xlu0 %v584
      %v586 = vpop.xlane.xlu0 %585
      %v587 = vsel %vm482, %v279, 0.0
      %v588 = vadd.f32 %v278, %v587
      %589 = vadd.xlane.f32.xlu0 %v588
      %v590 = vpop.xlane.xlu0 %589
      %v591 = vsel %vm482, %v281, 0.0
      %v592 = vadd.f32 %v280, %v591
      %593 = vadd.xlane.f32.xlu0 %v592
      %v594 = vpop.xlane.xlu0 %593
      %v595 = vsel %vm482, %v283, 0.0
      %v596 = vadd.f32 %v282, %v595
      %597 = vadd.xlane.f32.xlu0 %v596
      %v598 = vpop.xlane.xlu0 %597
      %v599 = vsel %vm482, %v285, 0.0
      %v600 = vadd.f32 %v284, %v599
      %601 = vadd.xlane.f32.xlu0 %v600
      %v602 = vpop.xlane.xlu0 %601
      %v603 = vsel %vm482, %v287, 0.0
      %v604 = vadd.f32 %v286, %v603
      %605 = vadd.xlane.f32.xlu0 %v604
      %v606 = vpop.xlane.xlu0 %605
      %v607 = vsel %vm482, %v289, 0.0
      %v608 = vadd.f32 %v288, %v607
      %609 = vadd.xlane.f32.xlu0 %v608
      %v610 = vpop.xlane.xlu0 %609
      %v611 = vsel %vm482, %v291, 0.0
      %v612 = vadd.f32 %v290, %v611
      %613 = vadd.xlane.f32.xlu0 %v612
      %v614 = vpop.xlane.xlu0 %613
      %v615 = vsel %vm482, %v293, 0.0
      %v616 = vadd.f32 %v292, %v615
      %617 = vadd.xlane.f32.xlu0 %v616
      %v618 = vpop.xlane.xlu0 %617
      %v619 = vsel %vm482, %v295, 0.0
      %v620 = vadd.f32 %v294, %v619
      %621 = vadd.xlane.f32.xlu0 %v620
      %v622 = vpop.xlane.xlu0 %621
      %v623 = vsel %vm482, %v297, 0.0
      %v624 = vadd.f32 %v296, %v623
      %625 = vadd.xlane.f32.xlu0 %v624
      %v626 = vpop.xlane.xlu0 %625
      %v627 = vsel %vm482, %v299, 0.0
      %v628 = vadd.f32 %v298, %v627
      %629 = vadd.xlane.f32.xlu0 %v628
      %v630 = vpop.xlane.xlu0 %629
      %v631 = vsel %vm482, %v301, 0.0
      %v632 = vadd.f32 %v300, %v631
      %633 = vadd.xlane.f32.xlu0 %v632
      %v634 = vpop.xlane.xlu0 %633
      %v635 = vsel %vm482, %v303, 0.0
      %v636 = vadd.f32 %v302, %v635
      %637 = vadd.xlane.f32.xlu0 %v636
      %v638 = vpop.xlane.xlu0 %637
      %v639 = vsel %vm482, %v305, 0.0
      %v640 = vadd.f32 %v304, %v639
      %641 = vadd.xlane.f32.xlu0 %v640
      %v642 = vpop.xlane.xlu0 %641
      %v643 = vsel %vm482, %v307, 0.0
      %v644 = vadd.f32 %v306, %v643
      %645 = vadd.xlane.f32.xlu0 %v644
      %v646 = vpop.xlane.xlu0 %645
      %v647 = vsel %vm482, %v309, 0.0
      %v648 = vadd.f32 %v308, %v647
      %649 = vadd.xlane.f32.xlu0 %v648
      %v650 = vpop.xlane.xlu0 %649
      %v651 = vsel %vm482, %v311, 0.0
      %v652 = vadd.f32 %v310, %v651
      %653 = vadd.xlane.f32.xlu0 %v652
      %v654 = vpop.xlane.xlu0 %653
      %v655 = vsel %vm482, %v313, 0.0
      %v656 = vadd.f32 %v312, %v655
      %657 = vadd.xlane.f32.xlu0 %v656
      %v658 = vpop.xlane.xlu0 %657
      %v659 = vsel %vm482, %v315, 0.0
      %v660 = vadd.f32 %v314, %v659
      %661 = vadd.xlane.f32.xlu0 %v660
      %v662 = vpop.xlane.xlu0 %661
      %v663 = vsel %vm482, %v317, 0.0
      %v664 = vadd.f32 %v316, %v663
      %665 = vadd.xlane.f32.xlu0 %v664
      %v666 = vpop.xlane.xlu0 %665
      %v667 = vsel %vm482, %v319, 0.0
      %v668 = vadd.f32 %v318, %v667
      %669 = vadd.xlane.f32.xlu0 %v668
      %v670 = vpop.xlane.xlu0 %669
      %v671 = vsel %vm482, %v321, 0.0
      %v672 = vadd.f32 %v320, %v671
      %673 = vadd.xlane.f32.xlu0 %v672
      %v674 = vpop.xlane.xlu0 %673
      %v675 = vsel %vm482, %v323, 0.0
      %v676 = vadd.f32 %v322, %v675
      %677 = vadd.xlane.f32.xlu0 %v676
      %v678 = vpop.xlane.xlu0 %677
      %v679 = vsel %vm482, %v325, 0.0
      %v680 = vadd.f32 %v324, %v679
      %681 = vadd.xlane.f32.xlu0 %v680
      %v682 = vpop.xlane.xlu0 %681
      %v683 = vsel %vm482, %v327, 0.0
      %v684 = vadd.f32 %v326, %v683
      %685 = vadd.xlane.f32.xlu0 %v684
      %v686 = vpop.xlane.xlu0 %685
      %v687 = vsel %vm482, %v329, 0.0
      %v688 = vadd.f32 %v328, %v687
      %689 = vadd.xlane.f32.xlu0 %v688
      %v690 = vpop.xlane.xlu0 %689
      %v691 = vsel %vm482, %v331, 0.0
      %v692 = vadd.f32 %v330, %v691
      %693 = vadd.xlane.f32.xlu0 %v692
      %v694 = vpop.xlane.xlu0 %693
      %v695 = vsel %vm482, %v333, 0.0
      %v696 = vadd.f32 %v332, %v695
      %697 = vadd.xlane.f32.xlu0 %v696
      %v698 = vpop.xlane.xlu0 %697
      %v699 = vsel %vm482, %v335, 0.0
      %v700 = vadd.f32 %v334, %v699
      %701 = vadd.xlane.f32.xlu0 %v700
      %v702 = vpop.xlane.xlu0 %701
      %v703 = vsel %vm482, %v337, 0.0
      %v704 = vadd.f32 %v336, %v703
      %705 = vadd.xlane.f32.xlu0 %v704
      %v706 = vpop.xlane.xlu0 %705
      %v707 = vsel %vm482, %v339, 0.0
      %v708 = vadd.f32 %v338, %v707
      %709 = vadd.xlane.f32.xlu0 %v708
      %v710 = vpop.xlane.xlu0 %709
      %v711 = vsel %vm482, %v341, 0.0
      %v712 = vadd.f32 %v340, %v711
      %713 = vadd.xlane.f32.xlu0 %v712
      %v714 = vpop.xlane.xlu0 %713
      %v715 = vsel %vm482, %v343, 0.0
      %v716 = vadd.f32 %v342, %v715
      %717 = vadd.xlane.f32.xlu0 %v716
      %v718 = vpop.xlane.xlu0 %717
      %v719 = vsel %vm482, %v345, 0.0
      %v720 = vadd.f32 %v344, %v719
      %721 = vadd.xlane.f32.xlu0 %v720
      %v722 = vpop.xlane.xlu0 %721
      %v723 = vsel %vm482, %v347, 0.0
      %v724 = vadd.f32 %v346, %v723
      %725 = vadd.xlane.f32.xlu0 %v724
      %v726 = vpop.xlane.xlu0 %725
      %v727 = vsel %vm482, %v349, 0.0
      %v728 = vadd.f32 %v348, %v727
      %729 = vadd.xlane.f32.xlu0 %v728
      %v730 = vpop.xlane.xlu0 %729
      %v731 = vsel %vm482, %v351, 0.0
      %v732 = vadd.f32 %v350, %v731
      %733 = vadd.xlane.f32.xlu0 %v732
      %v734 = vpop.xlane.xlu0 %733
      %v735 = vsel %vm482, %v353, 0.0
      %v736 = vadd.f32 %v352, %v735
      %737 = vadd.xlane.f32.xlu0 %v736
      %v738 = vpop.xlane.xlu0 %737
      %v739 = vmul.f32 %v226, %v226
      %v740 = vmul.f32 %v227, %v227
      %v741 = vmul.f32 %v228, %v228
      %v742 = vmul.f32 %v229, %v229
      %v743 = vmul.f32 %v230, %v230
      %v744 = vmul.f32 %v231, %v231
      %v745 = vmul.f32 %v232, %v232
      %v746 = vmul.f32 %v233, %v233
      %v747 = vmul.f32 %v234, %v234
      %v748 = vmul.f32 %v235, %v235
      %v749 = vmul.f32 %v236, %v236
      %v750 = vmul.f32 %v237, %v237
      %v751 = vmul.f32 %v238, %v238
      %v752 = vmul.f32 %v239, %v239
      %v753 = vmul.f32 %v240, %v240
      %v754 = vmul.f32 %v241, %v241
      %v755 = vmul.f32 %v242, %v242
      %v756 = vmul.f32 %v243, %v243
      %v757 = vmul.f32 %v244, %v244
      %v758 = vmul.f32 %v245, %v245
      %v759 = vmul.f32 %v246, %v246
      %v760 = vmul.f32 %v247, %v247
      %v761 = vmul.f32 %v248, %v248
      %v762 = vmul.f32 %v249, %v249
      %v763 = vmul.f32 %v250, %v250
      %v764 = vmul.f32 %v251, %v251
      %v765 = vmul.f32 %v252, %v252
      %v766 = vmul.f32 %v253, %v253
      %v767 = vmul.f32 %v254, %v254
      %v768 = vmul.f32 %v255, %v255
      %v769 = vmul.f32 %v256, %v256
      %v770 = vmul.f32 %v257, %v257
      %v771 = vmul.f32 %v258, %v258
      %v772 = vmul.f32 %v259, %v259
      %v773 = vmul.f32 %v260, %v260
      %v774 = vmul.f32 %v261, %v261
      %v775 = vmul.f32 %v262, %v262
      %v776 = vmul.f32 %v263, %v263
      %v777 = vmul.f32 %v264, %v264
      %v778 = vmul.f32 %v265, %v265
      %v779 = vmul.f32 %v266, %v266
      %v780 = vmul.f32 %v267, %v267
      %v781 = vmul.f32 %v268, %v268
      %v782 = vmul.f32 %v269, %v269
      %v783 = vmul.f32 %v270, %v270
      %v784 = vmul.f32 %v271, %v271
      %v785 = vmul.f32 %v272, %v272
      %v786 = vmul.f32 %v273, %v273
      %v787 = vmul.f32 %v274, %v274
      %v788 = vmul.f32 %v275, %v275
      %v789 = vmul.f32 %v276, %v276
      %v790 = vmul.f32 %v277, %v277
      %v791 = vmul.f32 %v278, %v278
      %v792 = vmul.f32 %v279, %v279
      %v793 = vmul.f32 %v280, %v280
      %v794 = vmul.f32 %v281, %v281
      %v795 = vmul.f32 %v282, %v282
      %v796 = vmul.f32 %v283, %v283
      %v797 = vmul.f32 %v284, %v284
      %v798 = vmul.f32 %v285, %v285
      %v799 = vmul.f32 %v286, %v286
      %v800 = vmul.f32 %v287, %v287
      %v801 = vmul.f32 %v288, %v288
      %v802 = vmul.f32 %v289, %v289
      %v803 = vmul.f32 %v290, %v290
      %v804 = vmul.f32 %v291, %v291
      %v805 = vmul.f32 %v292, %v292
      %v806 = vmul.f32 %v293, %v293
      %v807 = vmul.f32 %v294, %v294
      %v808 = vmul.f32 %v295, %v295
      %v809 = vmul.f32 %v296, %v296
      %v810 = vmul.f32 %v297, %v297
      %v811 = vmul.f32 %v298, %v298
      %v812 = vmul.f32 %v299, %v299
      %v813 = vmul.f32 %v300, %v300
      %v814 = vmul.f32 %v301, %v301
      %v815 = vmul.f32 %v302, %v302
      %v816 = vmul.f32 %v303, %v303
      %v817 = vmul.f32 %v304, %v304
      %v818 = vmul.f32 %v305, %v305
      %v819 = vmul.f32 %v306, %v306
      %v820 = vmul.f32 %v307, %v307
      %v821 = vmul.f32 %v308, %v308
      %v822 = vmul.f32 %v309, %v309
      %v823 = vmul.f32 %v310, %v310
      %v824 = vmul.f32 %v311, %v311
      %v825 = vmul.f32 %v312, %v312
      %v826 = vmul.f32 %v313, %v313
      %v827 = vmul.f32 %v314, %v314
      %v828 = vmul.f32 %v315, %v315
      %v829 = vmul.f32 %v316, %v316
      %v830 = vmul.f32 %v317, %v317
      %v831 = vmul.f32 %v318, %v318
      %v832 = vmul.f32 %v319, %v319
      %v833 = vmul.f32 %v320, %v320
      %v834 = vmul.f32 %v321, %v321
      %v835 = vmul.f32 %v322, %v322
      %v836 = vmul.f32 %v323, %v323
      %v837 = vmul.f32 %v324, %v324
      %v838 = vmul.f32 %v325, %v325
      %v839 = vmul.f32 %v326, %v326
      %v840 = vmul.f32 %v327, %v327
      %v841 = vmul.f32 %v328, %v328
      %v842 = vmul.f32 %v329, %v329
      %v843 = vmul.f32 %v330, %v330
      %v844 = vmul.f32 %v331, %v331
      %v845 = vmul.f32 %v332, %v332
      %v846 = vmul.f32 %v333, %v333
      %v847 = vmul.f32 %v334, %v334
      %v848 = vmul.f32 %v335, %v335
      %v849 = vmul.f32 %v336, %v336
      %v850 = vmul.f32 %v337, %v337
      %v851 = vmul.f32 %v338, %v338
      %v852 = vmul.f32 %v339, %v339
      %v853 = vmul.f32 %v340, %v340
      %v854 = vmul.f32 %v341, %v341
      %v855 = vmul.f32 %v342, %v342
      %v856 = vmul.f32 %v343, %v343
      %v857 = vmul.f32 %v344, %v344
      %v858 = vmul.f32 %v345, %v345
      %v859 = vmul.f32 %v346, %v346
      %v860 = vmul.f32 %v347, %v347
      %v861 = vmul.f32 %v348, %v348
      %v862 = vmul.f32 %v349, %v349
      %v863 = vmul.f32 %v350, %v350
      %v864 = vmul.f32 %v351, %v351
      %v865 = vmul.f32 %v352, %v352
      %v866 = vmul.f32 %v353, %v353
      %v867 = vsel %vm482, %v740, 0.0
      %v868 = vadd.f32 %v739, %v867
      %869 = vadd.xlane.f32.xlu0 %v868
      %v870 = vpop.xlane.xlu0 %869
      %v871 = vsel %vm482, %v742, 0.0
      %v872 = vadd.f32 %v741, %v871
      %873 = vadd.xlane.f32.xlu0 %v872
      %v874 = vpop.xlane.xlu0 %873
      %v875 = vsel %vm482, %v744, 0.0
      %v876 = vadd.f32 %v743, %v875
      %877 = vadd.xlane.f32.xlu0 %v876
      %v878 = vpop.xlane.xlu0 %877
      %v879 = vsel %vm482, %v746, 0.0
      %v880 = vadd.f32 %v745, %v879
      %881 = vadd.xlane.f32.xlu0 %v880
      %v882 = vpop.xlane.xlu0 %881
      %v883 = vsel %vm482, %v748, 0.0
      %v884 = vadd.f32 %v747, %v883
      %885 = vadd.xlane.f32.xlu0 %v884
      %v886 = vpop.xlane.xlu0 %885
      %v887 = vsel %vm482, %v750, 0.0
      %v888 = vadd.f32 %v749, %v887
      %889 = vadd.xlane.f32.xlu0 %v888
      %v890 = vpop.xlane.xlu0 %889
      %v891 = vsel %vm482, %v752, 0.0
      %v892 = vadd.f32 %v751, %v891
      %893 = vadd.xlane.f32.xlu0 %v892
      %v894 = vpop.xlane.xlu0 %893
      %v895 = vsel %vm482, %v754, 0.0
      %v896 = vadd.f32 %v753, %v895
      %897 = vadd.xlane.f32.xlu0 %v896
      %v898 = vpop.xlane.xlu0 %897
      %v899 = vsel %vm482, %v756, 0.0
      %v900 = vadd.f32 %v755, %v899
      %901 = vadd.xlane.f32.xlu0 %v900
      %v902 = vpop.xlane.xlu0 %901
      %v903 = vsel %vm482, %v758, 0.0
      %v904 = vadd.f32 %v757, %v903
      %905 = vadd.xlane.f32.xlu0 %v904
      %v906 = vpop.xlane.xlu0 %905
      %v907 = vsel %vm482, %v760, 0.0
      %v908 = vadd.f32 %v759, %v907
      %909 = vadd.xlane.f32.xlu0 %v908
      %v910 = vpop.xlane.xlu0 %909
      %v911 = vsel %vm482, %v762, 0.0
      %v912 = vadd.f32 %v761, %v911
      %913 = vadd.xlane.f32.xlu0 %v912
      %v914 = vpop.xlane.xlu0 %913
      %v915 = vsel %vm482, %v764, 0.0
      %v916 = vadd.f32 %v763, %v915
      %917 = vadd.xlane.f32.xlu0 %v916
      %v918 = vpop.xlane.xlu0 %917
      %v919 = vsel %vm482, %v766, 0.0
      %v920 = vadd.f32 %v765, %v919
      %921 = vadd.xlane.f32.xlu0 %v920
      %v922 = vpop.xlane.xlu0 %921
      %v923 = vsel %vm482, %v768, 0.0
      %v924 = vadd.f32 %v767, %v923
      %925 = vadd.xlane.f32.xlu0 %v924
      %v926 = vpop.xlane.xlu0 %925
      %v927 = vsel %vm482, %v770, 0.0
      %v928 = vadd.f32 %v769, %v927
      %929 = vadd.xlane.f32.xlu0 %v928
      %v930 = vpop.xlane.xlu0 %929
      %v931 = vsel %vm482, %v772, 0.0
      %v932 = vadd.f32 %v771, %v931
      %933 = vadd.xlane.f32.xlu0 %v932
      %v934 = vpop.xlane.xlu0 %933
      %v935 = vsel %vm482, %v774, 0.0
      %v936 = vadd.f32 %v773, %v935
      %937 = vadd.xlane.f32.xlu0 %v936
      %v938 = vpop.xlane.xlu0 %937
      %v939 = vsel %vm482, %v776, 0.0
      %v940 = vadd.f32 %v775, %v939
      %941 = vadd.xlane.f32.xlu0 %v940
      %v942 = vpop.xlane.xlu0 %941
      %v943 = vsel %vm482, %v778, 0.0
      %v944 = vadd.f32 %v777, %v943
      %945 = vadd.xlane.f32.xlu0 %v944
      %v946 = vpop.xlane.xlu0 %945
      %v947 = vsel %vm482, %v780, 0.0
      %v948 = vadd.f32 %v779, %v947
      %949 = vadd.xlane.f32.xlu0 %v948
      %v950 = vpop.xlane.xlu0 %949
      %v951 = vsel %vm482, %v782, 0.0
      %v952 = vadd.f32 %v781, %v951
      %953 = vadd.xlane.f32.xlu0 %v952
      %v954 = vpop.xlane.xlu0 %953
      %v955 = vsel %vm482, %v784, 0.0
      %v956 = vadd.f32 %v783, %v955
      %957 = vadd.xlane.f32.xlu0 %v956
      %v958 = vpop.xlane.xlu0 %957
      %v959 = vsel %vm482, %v786, 0.0
      %v960 = vadd.f32 %v785, %v959
      %961 = vadd.xlane.f32.xlu0 %v960
      %v962 = vpop.xlane.xlu0 %961
      %v963 = vsel %vm482, %v788, 0.0
      %v964 = vadd.f32 %v787, %v963
      %965 = vadd.xlane.f32.xlu0 %v964
      %v966 = vpop.xlane.xlu0 %965
      %v967 = vsel %vm482, %v790, 0.0
      %v968 = vadd.f32 %v789, %v967
      %969 = vadd.xlane.f32.xlu0 %v968
      %v970 = vpop.xlane.xlu0 %969
      %v971 = vsel %vm482, %v792, 0.0
      %v972 = vadd.f32 %v791, %v971
      %973 = vadd.xlane.f32.xlu0 %v972
      %v974 = vpop.xlane.xlu0 %973
      %v975 = vsel %vm482, %v794, 0.0
      %v976 = vadd.f32 %v793, %v975
      %977 = vadd.xlane.f32.xlu0 %v976
      %v978 = vpop.xlane.xlu0 %977
      %v979 = vsel %vm482, %v796, 0.0
      %v980 = vadd.f32 %v795, %v979
      %981 = vadd.xlane.f32.xlu0 %v980
      %v982 = vpop.xlane.xlu0 %981
      %v983 = vsel %vm482, %v798, 0.0
      %v984 = vadd.f32 %v797, %v983
      %985 = vadd.xlane.f32.xlu0 %v984
      %v986 = vpop.xlane.xlu0 %985
      %v987 = vsel %vm482, %v800, 0.0
      %v988 = vadd.f32 %v799, %v987
      %989 = vadd.xlane.f32.xlu0 %v988
      %v990 = vpop.xlane.xlu0 %989
      %v991 = vsel %vm482, %v802, 0.0
      %v992 = vadd.f32 %v801, %v991
      %993 = vadd.xlane.f32.xlu0 %v992
      %v994 = vpop.xlane.xlu0 %993
      %v995 = vsel %vm482, %v804, 0.0
      %v996 = vadd.f32 %v803, %v995
      %997 = vadd.xlane.f32.xlu0 %v996
      %v998 = vpop.xlane.xlu0 %997
      %v999 = vsel %vm482, %v806, 0.0
      %v1000 = vadd.f32 %v805, %v999
      %1001 = vadd.xlane.f32.xlu0 %v1000
      %v1002 = vpop.xlane.xlu0 %1001
      %v1003 = vsel %vm482, %v808, 0.0
      %v1004 = vadd.f32 %v807, %v1003
      %1005 = vadd.xlane.f32.xlu0 %v1004
      %v1006 = vpop.xlane.xlu0 %1005
      %v1007 = vsel %vm482, %v810, 0.0
      %v1008 = vadd.f32 %v809, %v1007
      %1009 = vadd.xlane.f32.xlu0 %v1008
      %v1010 = vpop.xlane.xlu0 %1009
      %v1011 = vsel %vm482, %v812, 0.0
      %v1012 = vadd.f32 %v811, %v1011
      %1013 = vadd.xlane.f32.xlu0 %v1012
      %v1014 = vpop.xlane.xlu0 %1013
      %v1015 = vsel %vm482, %v814, 0.0
      %v1016 = vadd.f32 %v813, %v1015
      %1017 = vadd.xlane.f32.xlu0 %v1016
      %v1018 = vpop.xlane.xlu0 %1017
      %v1019 = vsel %vm482, %v816, 0.0
      %v1020 = vadd.f32 %v815, %v1019
      %1021 = vadd.xlane.f32.xlu0 %v1020
      %v1022 = vpop.xlane.xlu0 %1021
      %v1023 = vsel %vm482, %v818, 0.0
      %v1024 = vadd.f32 %v817, %v1023
      %1025 = vadd.xlane.f32.xlu0 %v1024
      %v1026 = vpop.xlane.xlu0 %1025
      %v1027 = vsel %vm482, %v820, 0.0
      %v1028 = vadd.f32 %v819, %v1027
      %1029 = vadd.xlane.f32.xlu0 %v1028
      %v1030 = vpop.xlane.xlu0 %1029
      %v1031 = vsel %vm482, %v822, 0.0
      %v1032 = vadd.f32 %v821, %v1031
      %1033 = vadd.xlane.f32.xlu0 %v1032
      %v1034 = vpop.xlane.xlu0 %1033
      %v1035 = vsel %vm482, %v824, 0.0
      %v1036 = vadd.f32 %v823, %v1035
      %1037 = vadd.xlane.f32.xlu0 %v1036
      %v1038 = vpop.xlane.xlu0 %1037
      %v1039 = vsel %vm482, %v826, 0.0
      %v1040 = vadd.f32 %v825, %v1039
      %1041 = vadd.xlane.f32.xlu0 %v1040
      %v1042 = vpop.xlane.xlu0 %1041
      %v1043 = vsel %vm482, %v828, 0.0
      %v1044 = vadd.f32 %v827, %v1043
      %1045 = vadd.xlane.f32.xlu0 %v1044
      %v1046 = vpop.xlane.xlu0 %1045
      %v1047 = vsel %vm482, %v830, 0.0
      %v1048 = vadd.f32 %v829, %v1047
      %1049 = vadd.xlane.f32.xlu0 %v1048
      %v1050 = vpop.xlane.xlu0 %1049
      %v1051 = vsel %vm482, %v832, 0.0
      %v1052 = vadd.f32 %v831, %v1051
      %1053 = vadd.xlane.f32.xlu0 %v1052
      %v1054 = vpop.xlane.xlu0 %1053
      %v1055 = vsel %vm482, %v834, 0.0
      %v1056 = vadd.f32 %v833, %v1055
      %1057 = vadd.xlane.f32.xlu0 %v1056
      %v1058 = vpop.xlane.xlu0 %1057
      %v1059 = vsel %vm482, %v836, 0.0
      %v1060 = vadd.f32 %v835, %v1059
      %1061 = vadd.xlane.f32.xlu0 %v1060
      %v1062 = vpop.xlane.xlu0 %1061
      %v1063 = vsel %vm482, %v838, 0.0
      %v1064 = vadd.f32 %v837, %v1063
      %1065 = vadd.xlane.f32.xlu0 %v1064
      %v1066 = vpop.xlane.xlu0 %1065
      %v1067 = vsel %vm482, %v840, 0.0
      %v1068 = vadd.f32 %v839, %v1067
      %1069 = vadd.xlane.f32.xlu0 %v1068
      %v1070 = vpop.xlane.xlu0 %1069
      %v1071 = vsel %vm482, %v842, 0.0
      %v1072 = vadd.f32 %v841, %v1071
      %1073 = vadd.xlane.f32.xlu0 %v1072
      %v1074 = vpop.xlane.xlu0 %1073
      %v1075 = vsel %vm482, %v844, 0.0
      %v1076 = vadd.f32 %v843, %v1075
      %1077 = vadd.xlane.f32.xlu0 %v1076
      %v1078 = vpop.xlane.xlu0 %1077
      %v1079 = vsel %vm482, %v846, 0.0
      %v1080 = vadd.f32 %v845, %v1079
      %1081 = vadd.xlane.f32.xlu0 %v1080
      %v1082 = vpop.xlane.xlu0 %1081
      %v1083 = vsel %vm482, %v848, 0.0
      %v1084 = vadd.f32 %v847, %v1083
      %1085 = vadd.xlane.f32.xlu0 %v1084
      %v1086 = vpop.xlane.xlu0 %1085
      %v1087 = vsel %vm482, %v850, 0.0
      %v1088 = vadd.f32 %v849, %v1087
      %1089 = vadd.xlane.f32.xlu0 %v1088
      %v1090 = vpop.xlane.xlu0 %1089
      %v1091 = vsel %vm482, %v852, 0.0
      %v1092 = vadd.f32 %v851, %v1091
      %1093 = vadd.xlane.f32.xlu0 %v1092
      %v1094 = vpop.xlane.xlu0 %1093
      %v1095 = vsel %vm482, %v854, 0.0
      %v1096 = vadd.f32 %v853, %v1095
      %1097 = vadd.xlane.f32.xlu0 %v1096
      %v1098 = vpop.xlane.xlu0 %1097
      %v1099 = vsel %vm482, %v856, 0.0
      %v1100 = vadd.f32 %v855, %v1099
      %1101 = vadd.xlane.f32.xlu0 %v1100
      %v1102 = vpop.xlane.xlu0 %1101
      %v1103 = vsel %vm482, %v858, 0.0
      %v1104 = vadd.f32 %v857, %v1103
      %1105 = vadd.xlane.f32.xlu0 %v1104
      %v1106 = vpop.xlane.xlu0 %1105
      %v1107 = vsel %vm482, %v860, 0.0
      %v1108 = vadd.f32 %v859, %v1107
      %1109 = vadd.xlane.f32.xlu0 %v1108
      %v1110 = vpop.xlane.xlu0 %1109
      %v1111 = vsel %vm482, %v862, 0.0
      %v1112 = vadd.f32 %v861, %v1111
      %1113 = vadd.xlane.f32.xlu0 %v1112
      %v1114 = vpop.xlane.xlu0 %1113
      %v1115 = vsel %vm482, %v864, 0.0
      %v1116 = vadd.f32 %v863, %v1115
      %1117 = vadd.xlane.f32.xlu0 %v1116
      %v1118 = vpop.xlane.xlu0 %1117
      %v1119 = vsel %vm482, %v866, 0.0
      %v1120 = vadd.f32 %v865, %v1119
      %1121 = vadd.xlane.f32.xlu0 %v1120
      %v1122 = vpop.xlane.xlu0 %1121
      %v1123 = vmul.f32 %v486, 0.0051020407
      %v1124 = vmul.f32 %v490, 0.0051020407
      %v1125 = vmul.f32 %v494, 0.0051020407
      %v1126 = vmul.f32 %v498, 0.0051020407
      %v1127 = vmul.f32 %v502, 0.0051020407
      %v1128 = vmul.f32 %v506, 0.0051020407
      %v1129 = vmul.f32 %v510, 0.0051020407
      %v1130 = vmul.f32 %v514, 0.0051020407
      %v1131 = vmul.f32 %v518, 0.0051020407
      %v1132 = vmul.f32 %v522, 0.0051020407
      %v1133 = vmul.f32 %v526, 0.0051020407
      %v1134 = vmul.f32 %v530, 0.0051020407
      %v1135 = vmul.f32 %v534, 0.0051020407
      %v1136 = vmul.f32 %v538, 0.0051020407
      %v1137 = vmul.f32 %v542, 0.0051020407
      %v1138 = vmul.f32 %v546, 0.0051020407
      %v1139 = vmul.f32 %v550, 0.0051020407
      %v1140 = vmul.f32 %v554, 0.0051020407
      %v1141 = vmul.f32 %v558, 0.0051020407
      %v1142 = vmul.f32 %v562, 0.0051020407
      %v1143 = vmul.f32 %v566, 0.0051020407
      %v1144 = vmul.f32 %v570, 0.0051020407
      %v1145 = vmul.f32 %v574, 0.0051020407
      %v1146 = vmul.f32 %v578, 0.0051020407
      %v1147 = vmul.f32 %v582, 0.0051020407
      %v1148 = vmul.f32 %v586, 0.0051020407
      %v1149 = vmul.f32 %v590, 0.0051020407
      %v1150 = vmul.f32 %v594, 0.0051020407
      %v1151 = vmul.f32 %v598, 0.0051020407
      %v1152 = vmul.f32 %v602, 0.0051020407
      %v1153 = vmul.f32 %v606, 0.0051020407
      %v1154 = vmul.f32 %v610, 0.0051020407
      %v1155 = vmul.f32 %v614, 0.0051020407
      %v1156 = vmul.f32 %v618, 0.0051020407
      %v1157 = vmul.f32 %v622, 0.0051020407
      %v1158 = vmul.f32 %v626, 0.0051020407
      %v1159 = vmul.f32 %v630, 0.0051020407
      %v1160 = vmul.f32 %v634, 0.0051020407
      %v1161 = vmul.f32 %v638, 0.0051020407
      %v1162 = vmul.f32 %v642, 0.0051020407
      %v1163 = vmul.f32 %v646, 0.0051020407
      %v1164 = vmul.f32 %v650, 0.0051020407
      %v1165 = vmul.f32 %v654, 0.0051020407
      %v1166 = vmul.f32 %v658, 0.0051020407
      %v1167 = vmul.f32 %v662, 0.0051020407
      %v1168 = vmul.f32 %v666, 0.0051020407
      %v1169 = vmul.f32 %v670, 0.0051020407
      %v1170 = vmul.f32 %v674, 0.0051020407
      %v1171 = vmul.f32 %v678, 0.0051020407
      %v1172 = vmul.f32 %v682, 0.0051020407
      %v1173 = vmul.f32 %v686, 0.0051020407
      %v1174 = vmul.f32 %v690, 0.0051020407
      %v1175 = vmul.f32 %v694, 0.0051020407
      %v1176 = vmul.f32 %v698, 0.0051020407
      %v1177 = vmul.f32 %v702, 0.0051020407
      %v1178 = vmul.f32 %v706, 0.0051020407
      %v1179 = vmul.f32 %v710, 0.0051020407
      %v1180 = vmul.f32 %v714, 0.0051020407
      %v1181 = vmul.f32 %v718, 0.0051020407
      %v1182 = vmul.f32 %v722, 0.0051020407
      %v1183 = vmul.f32 %v726, 0.0051020407
      %v1184 = vmul.f32 %v730, 0.0051020407
      %v1185 = vmul.f32 %v734, 0.0051020407
      %v1186 = vmul.f32 %v738, 0.0051020407
      %v1187 = vmul.f32 %v870, 0.0051020407
      %v1188 = vmul.f32 %v874, 0.0051020407
      %v1189 = vmul.f32 %v878, 0.0051020407
      %v1190 = vmul.f32 %v882, 0.0051020407
      %v1191 = vmul.f32 %v886, 0.0051020407
      %v1192 = vmul.f32 %v890, 0.0051020407
      %v1193 = vmul.f32 %v894, 0.0051020407
      %v1194 = vmul.f32 %v898, 0.0051020407
      %v1195 = vmul.f32 %v902, 0.0051020407
      %v1196 = vmul.f32 %v906, 0.0051020407
      %v1197 = vmul.f32 %v910, 0.0051020407
      %v1198 = vmul.f32 %v914, 0.0051020407
      %v1199 = vmul.f32 %v918, 0.0051020407
      %v1200 = vmul.f32 %v922, 0.0051020407
      %v1201 = vmul.f32 %v926, 0.0051020407
      %v1202 = vmul.f32 %v930, 0.0051020407
      %v1203 = vmul.f32 %v934, 0.0051020407
      %v1204 = vmul.f32 %v938, 0.0051020407
      %v1205 = vmul.f32 %v942, 0.0051020407
      %v1206 = vmul.f32 %v946, 0.0051020407
      %v1207 = vmul.f32 %v950, 0.0051020407
      %v1208 = vmul.f32 %v954, 0.0051020407
      %v1209 = vmul.f32 %v958, 0.0051020407
      %v1210 = vmul.f32 %v962, 0.0051020407
      %v1211 = vmul.f32 %v966, 0.0051020407
      %v1212 = vmul.f32 %v970, 0.0051020407
      %v1213 = vmul.f32 %v974, 0.0051020407
      %v1214 = vmul.f32 %v978, 0.0051020407
      %v1215 = vmul.f32 %v982, 0.0051020407
      %v1216 = vmul.f32 %v986, 0.0051020407
      %v1217 = vmul.f32 %v990, 0.0051020407
      %v1218 = vmul.f32 %v994, 0.0051020407
      %v1219 = vmul.f32 %v998, 0.0051020407
      %v1220 = vmul.f32 %v1002, 0.0051020407
      %v1221 = vmul.f32 %v1006, 0.0051020407
      %v1222 = vmul.f32 %v1010, 0.0051020407
      %v1223 = vmul.f32 %v1014, 0.0051020407
      %v1224 = vmul.f32 %v1018, 0.0051020407
      %v1225 = vmul.f32 %v1022, 0.0051020407
      %v1226 = vmul.f32 %v1026, 0.0051020407
      %v1227 = vmul.f32 %v1030, 0.0051020407
      %v1228 = vmul.f32 %v1034, 0.0051020407
      %v1229 = vmul.f32 %v1038, 0.0051020407
      %v1230 = vmul.f32 %v1042, 0.0051020407
      %v1231 = vmul.f32 %v1046, 0.0051020407
      %v1232 = vmul.f32 %v1050, 0.0051020407
      %v1233 = vmul.f32 %v1054, 0.0051020407
      %v1234 = vmul.f32 %v1058, 0.0051020407
      %v1235 = vmul.f32 %v1062, 0.0051020407
      %v1236 = vmul.f32 %v1066, 0.0051020407
      %v1237 = vmul.f32 %v1070, 0.0051020407
      %v1238 = vmul.f32 %v1074, 0.0051020407
      %v1239 = vmul.f32 %v1078, 0.0051020407
      %v1240 = vmul.f32 %v1082, 0.0051020407
      %v1241 = vmul.f32 %v1086, 0.0051020407
      %v1242 = vmul.f32 %v1090, 0.0051020407
      %v1243 = vmul.f32 %v1094, 0.0051020407
      %v1244 = vmul.f32 %v1098, 0.0051020407
      %v1245 = vmul.f32 %v1102, 0.0051020407
      %v1246 = vmul.f32 %v1106, 0.0051020407
      %v1247 = vmul.f32 %v1110, 0.0051020407
      %v1248 = vmul.f32 %v1114, 0.0051020407
      %v1249 = vmul.f32 %v1118, 0.0051020407
      %v1250 = vmul.f32 %v1122, 0.0051020407
      %v1251 = vmul.f32 %v1123, %v1123
      %v1252 = vmul.f32 %v1124, %v1124
      %v1253 = vmul.f32 %v1125, %v1125
      %v1254 = vmul.f32 %v1126, %v1126
      %v1255 = vmul.f32 %v1127, %v1127
      %v1256 = vmul.f32 %v1128, %v1128
      %v1257 = vmul.f32 %v1129, %v1129
      %v1258 = vmul.f32 %v1130, %v1130
      %v1259 = vmul.f32 %v1131, %v1131
      %v1260 = vmul.f32 %v1132, %v1132
      %v1261 = vmul.f32 %v1133, %v1133
      %v1262 = vmul.f32 %v1134, %v1134
      %v1263 = vmul.f32 %v1135, %v1135
      %v1264 = vmul.f32 %v1136, %v1136
      %v1265 = vmul.f32 %v1137, %v1137
      %v1266 = vmul.f32 %v1138, %v1138
      %v1267 = vmul.f32 %v1139, %v1139
      %v1268 = vmul.f32 %v1140, %v1140
      %v1269 = vmul.f32 %v1141, %v1141
      %v1270 = vmul.f32 %v1142, %v1142
      %v1271 = vmul.f32 %v1143, %v1143
      %v1272 = vmul.f32 %v1144, %v1144
      %v1273 = vmul.f32 %v1145, %v1145
      %v1274 = vmul.f32 %v1146, %v1146
      %v1275 = vmul.f32 %v1147, %v1147
      %v1276 = vmul.f32 %v1148, %v1148
      %v1277 = vmul.f32 %v1149, %v1149
      %v1278 = vmul.f32 %v1150, %v1150
      %v1279 = vmul.f32 %v1151, %v1151
      %v1280 = vmul.f32 %v1152, %v1152
      %v1281 = vmul.f32 %v1153, %v1153
      %v1282 = vmul.f32 %v1154, %v1154
      %v1283 = vmul.f32 %v1155, %v1155
      %v1284 = vmul.f32 %v1156, %v1156
      %v1285 = vmul.f32 %v1157, %v1157
      %v1286 = vmul.f32 %v1158, %v1158
      %v1287 = vmul.f32 %v1159, %v1159
      %v1288 = vmul.f32 %v1160, %v1160
      %v1289 = vmul.f32 %v1161, %v1161
      %v1290 = vmul.f32 %v1162, %v1162
      %v1291 = vmul.f32 %v1163, %v1163
      %v1292 = vmul.f32 %v1164, %v1164
      %v1293 = vmul.f32 %v1165, %v1165
      %v1294 = vmul.f32 %v1166, %v1166
      %v1295 = vmul.f32 %v1167, %v1167
      %v1296 = vmul.f32 %v1168, %v1168
      %v1297 = vmul.f32 %v1169, %v1169
      %v1298 = vmul.f32 %v1170, %v1170
      %v1299 = vmul.f32 %v1171, %v1171
      %v1300 = vmul.f32 %v1172, %v1172
      %v1301 = vmul.f32 %v1173, %v1173
      %v1302 = vmul.f32 %v1174, %v1174
      %v1303 = vmul.f32 %v1175, %v1175
      %v1304 = vmul.f32 %v1176, %v1176
      %v1305 = vmul.f32 %v1177, %v1177
      %v1306 = vmul.f32 %v1178, %v1178
      %v1307 = vmul.f32 %v1179, %v1179
      %v1308 = vmul.f32 %v1180, %v1180
      %v1309 = vmul.f32 %v1181, %v1181
      %v1310 = vmul.f32 %v1182, %v1182
      %v1311 = vmul.f32 %v1183, %v1183
      %v1312 = vmul.f32 %v1184, %v1184
      %v1313 = vmul.f32 %v1185, %v1185
      %v1314 = vmul.f32 %v1186, %v1186
      %v1315 = vsub.f32 %v1187, %v1251
      %v1316 = vsub.f32 %v1188, %v1252
      %v1317 = vsub.f32 %v1189, %v1253
      %v1318 = vsub.f32 %v1190, %v1254
      %v1319 = vsub.f32 %v1191, %v1255
      %v1320 = vsub.f32 %v1192, %v1256
      %v1321 = vsub.f32 %v1193, %v1257
      %v1322 = vsub.f32 %v1194, %v1258
      %v1323 = vsub.f32 %v1195, %v1259
      %v1324 = vsub.f32 %v1196, %v1260
      %v1325 = vsub.f32 %v1197, %v1261
      %v1326 = vsub.f32 %v1198, %v1262
      %v1327 = vsub.f32 %v1199, %v1263
      %v1328 = vsub.f32 %v1200, %v1264
      %v1329 = vsub.f32 %v1201, %v1265
      %v1330 = vsub.f32 %v1202, %v1266
      %v1331 = vsub.f32 %v1203, %v1267
      %v1332 = vsub.f32 %v1204, %v1268
      %v1333 = vsub.f32 %v1205, %v1269
      %v1334 = vsub.f32 %v1206, %v1270
      %v1335 = vsub.f32 %v1207, %v1271
      %v1336 = vsub.f32 %v1208, %v1272
      %v1337 = vsub.f32 %v1209, %v1273
      %v1338 = vsub.f32 %v1210, %v1274
      %v1339 = vsub.f32 %v1211, %v1275
      %v1340 = vsub.f32 %v1212, %v1276
      %v1341 = vsub.f32 %v1213, %v1277
      %v1342 = vsub.f32 %v1214, %v1278
      %v1343 = vsub.f32 %v1215, %v1279
      %v1344 = vsub.f32 %v1216, %v1280
      %v1345 = vsub.f32 %v1217, %v1281
      %v1346 = vsub.f32 %v1218, %v1282
      %v1347 = vsub.f32 %v1219, %v1283
      %v1348 = vsub.f32 %v1220, %v1284
      %v1349 = vsub.f32 %v1221, %v1285
      %v1350 = vsub.f32 %v1222, %v1286
      %v1351 = vsub.f32 %v1223, %v1287
      %v1352 = vsub.f32 %v1224, %v1288
      %v1353 = vsub.f32 %v1225, %v1289
      %v1354 = vsub.f32 %v1226, %v1290
      %v1355 = vsub.f32 %v1227, %v1291
      %v1356 = vsub.f32 %v1228, %v1292
      %v1357 = vsub.f32 %v1229, %v1293
      %v1358 = vsub.f32 %v1230, %v1294
      %v1359 = vsub.f32 %v1231, %v1295
      %v1360 = vsub.f32 %v1232, %v1296
      %v1361 = vsub.f32 %v1233, %v1297
      %v1362 = vsub.f32 %v1234, %v1298
      %v1363 = vsub.f32 %v1235, %v1299
      %v1364 = vsub.f32 %v1236, %v1300
      %v1365 = vsub.f32 %v1237, %v1301
      %v1366 = vsub.f32 %v1238, %v1302
      %v1367 = vsub.f32 %v1239, %v1303
      %v1368 = vsub.f32 %v1240, %v1304
      %v1369 = vsub.f32 %v1241, %v1305
      %v1370 = vsub.f32 %v1242, %v1306
      %v1371 = vsub.f32 %v1243, %v1307
      %v1372 = vsub.f32 %v1244, %v1308
      %v1373 = vsub.f32 %v1245, %v1309
      %v1374 = vsub.f32 %v1246, %v1310
      %v1375 = vsub.f32 %v1247, %v1311
      %v1376 = vsub.f32 %v1248, %v1312
      %v1377 = vsub.f32 %v1249, %v1313
      %v1378 = vsub.f32 %v1250, %v1314
      %v1379 = vmax.f32 %v1315, 0.0
      %v1380 = vmax.f32 %v1316, 0.0
      %v1381 = vmax.f32 %v1317, 0.0
      %v1382 = vmax.f32 %v1318, 0.0
      %v1383 = vmax.f32 %v1319, 0.0
      %v1384 = vmax.f32 %v1320, 0.0
      %v1385 = vmax.f32 %v1321, 0.0
      %v1386 = vmax.f32 %v1322, 0.0
      %v1387 = vmax.f32 %v1323, 0.0
      %v1388 = vmax.f32 %v1324, 0.0
      %v1389 = vmax.f32 %v1325, 0.0
      %v1390 = vmax.f32 %v1326, 0.0
      %v1391 = vmax.f32 %v1327, 0.0
      %v1392 = vmax.f32 %v1328, 0.0
      %v1393 = vmax.f32 %v1329, 0.0
      %v1394 = vmax.f32 %v1330, 0.0
      %v1395 = vmax.f32 %v1331, 0.0
      %v1396 = vmax.f32 %v1332, 0.0
      %v1397 = vmax.f32 %v1333, 0.0
      %v1398 = vmax.f32 %v1334, 0.0
      %v1399 = vmax.f32 %v1335, 0.0
      %v1400 = vmax.f32 %v1336, 0.0
      %v1401 = vmax.f32 %v1337, 0.0
      %v1402 = vmax.f32 %v1338, 0.0
      %v1403 = vmax.f32 %v1339, 0.0
      %v1404 = vmax.f32 %v1340, 0.0
      %v1405 = vmax.f32 %v1341, 0.0
      %v1406 = vmax.f32 %v1342, 0.0
      %v1407 = vmax.f32 %v1343, 0.0
      %v1408 = vmax.f32 %v1344, 0.0
      %v1409 = vmax.f32 %v1345, 0.0
      %v1410 = vmax.f32 %v1346, 0.0
      %v1411 = vmax.f32 %v1347, 0.0
      %v1412 = vmax.f32 %v1348, 0.0
      %v1413 = vmax.f32 %v1349, 0.0
      %v1414 = vmax.f32 %v1350, 0.0
      %v1415 = vmax.f32 %v1351, 0.0
      %v1416 = vmax.f32 %v1352, 0.0
      %v1417 = vmax.f32 %v1353, 0.0
      %v1418 = vmax.f32 %v1354, 0.0
      %v1419 = vmax.f32 %v1355, 0.0
      %v1420 = vmax.f32 %v1356, 0.0
      %v1421 = vmax.f32 %v1357, 0.0
      %v1422 = vmax.f32 %v1358, 0.0
      %v1423 = vmax.f32 %v1359, 0.0
      %v1424 = vmax.f32 %v1360, 0.0
      %v1425 = vmax.f32 %v1361, 0.0
      %v1426 = vmax.f32 %v1362, 0.0
      %v1427 = vmax.f32 %v1363, 0.0
      %v1428 = vmax.f32 %v1364, 0.0
      %v1429 = vmax.f32 %v1365, 0.0
      %v1430 = vmax.f32 %v1366, 0.0
      %v1431 = vmax.f32 %v1367, 0.0
      %v1432 = vmax.f32 %v1368, 0.0
      %v1433 = vmax.f32 %v1369, 0.0
      %v1434 = vmax.f32 %v1370, 0.0
      %v1435 = vmax.f32 %v1371, 0.0
      %v1436 = vmax.f32 %v1372, 0.0
      %v1437 = vmax.f32 %v1373, 0.0
      %v1438 = vmax.f32 %v1374, 0.0
      %v1439 = vmax.f32 %v1375, 0.0
      %v1440 = vmax.f32 %v1376, 0.0
      %v1441 = vmax.f32 %v1377, 0.0
      %v1442 = vmax.f32 %v1378, 0.0
      %v1443 = vadd.f32 %v1379, 1e-05
      %v1444 = vadd.f32 %v1380, 1e-05
      %v1445 = vadd.f32 %v1381, 1e-05
      %v1446 = vadd.f32 %v1382, 1e-05
      %v1447 = vadd.f32 %v1383, 1e-05
      %v1448 = vadd.f32 %v1384, 1e-05
      %v1449 = vadd.f32 %v1385, 1e-05
      %v1450 = vadd.f32 %v1386, 1e-05
      %v1451 = vadd.f32 %v1387, 1e-05
      %v1452 = vadd.f32 %v1388, 1e-05
      %v1453 = vadd.f32 %v1389, 1e-05
      %v1454 = vadd.f32 %v1390, 1e-05
      %v1455 = vadd.f32 %v1391, 1e-05
      %v1456 = vadd.f32 %v1392, 1e-05
      %v1457 = vadd.f32 %v1393, 1e-05
      %v1458 = vadd.f32 %v1394, 1e-05
      %v1459 = vadd.f32 %v1395, 1e-05
      %v1460 = vadd.f32 %v1396, 1e-05
      %v1461 = vadd.f32 %v1397, 1e-05
      %v1462 = vadd.f32 %v1398, 1e-05
      %v1463 = vadd.f32 %v1399, 1e-05
      %v1464 = vadd.f32 %v1400, 1e-05
      %v1465 = vadd.f32 %v1401, 1e-05
      %v1466 = vadd.f32 %v1402, 1e-05
      %v1467 = vadd.f32 %v1403, 1e-05
      %v1468 = vadd.f32 %v1404, 1e-05
      %v1469 = vadd.f32 %v1405, 1e-05
      %v1470 = vadd.f32 %v1406, 1e-05
      %v1471 = vadd.f32 %v1407, 1e-05
      %v1472 = vadd.f32 %v1408, 1e-05
      %v1473 = vadd.f32 %v1409, 1e-05
      %v1474 = vadd.f32 %v1410, 1e-05
      %v1475 = vadd.f32 %v1411, 1e-05
      %v1476 = vadd.f32 %v1412, 1e-05
      %v1477 = vadd.f32 %v1413, 1e-05
      %v1478 = vadd.f32 %v1414, 1e-05
      %v1479 = vadd.f32 %v1415, 1e-05
      %v1480 = vadd.f32 %v1416, 1e-05
      %v1481 = vadd.f32 %v1417, 1e-05
      %v1482 = vadd.f32 %v1418, 1e-05
      %v1483 = vadd.f32 %v1419, 1e-05
      %v1484 = vadd.f32 %v1420, 1e-05
      %v1485 = vadd.f32 %v1421, 1e-05
      %v1486 = vadd.f32 %v1422, 1e-05
      %v1487 = vadd.f32 %v1423, 1e-05
      %v1488 = vadd.f32 %v1424, 1e-05
      %v1489 = vadd.f32 %v1425, 1e-05
      %v1490 = vadd.f32 %v1426, 1e-05
      %v1491 = vadd.f32 %v1427, 1e-05
      %v1492 = vadd.f32 %v1428, 1e-05
      %v1493 = vadd.f32 %v1429, 1e-05
      %v1494 = vadd.f32 %v1430, 1e-05
      %v1495 = vadd.f32 %v1431, 1e-05
      %v1496 = vadd.f32 %v1432, 1e-05
      %v1497 = vadd.f32 %v1433, 1e-05
      %v1498 = vadd.f32 %v1434, 1e-05
      %v1499 = vadd.f32 %v1435, 1e-05
      %v1500 = vadd.f32 %v1436, 1e-05
      %v1501 = vadd.f32 %v1437, 1e-05
      %v1502 = vadd.f32 %v1438, 1e-05
      %v1503 = vadd.f32 %v1439, 1e-05
      %v1504 = vadd.f32 %v1440, 1e-05
      %v1505 = vadd.f32 %v1441, 1e-05
      %v1506 = vadd.f32 %v1442, 1e-05
      %v1507 = vrsqrt.pop %v1443
      %v1508 = vrsqrt.pop %v1444
      %v1509 = vrsqrt.pop %v1445
      %v1510 = vrsqrt.pop %v1446
      %v1511 = vrsqrt.pop %v1447
      %v1512 = vrsqrt.pop %v1448
      %v1513 = vrsqrt.pop %v1449
      %v1514 = vrsqrt.pop %v1450
      %v1515 = vrsqrt.pop %v1451
      %v1516 = vrsqrt.pop %v1452
      %v1517 = vrsqrt.pop %v1453
      %v1518 = vrsqrt.pop %v1454
      %v1519 = vrsqrt.pop %v1455
      %v1520 = vrsqrt.pop %v1456
      %v1521 = vrsqrt.pop %v1457
      %v1522 = vrsqrt.pop %v1458
      %v1523 = vrsqrt.pop %v1459
      %v1524 = vrsqrt.pop %v1460
      %v1525 = vrsqrt.pop %v1461
      %v1526 = vrsqrt.pop %v1462
      %v1527 = vrsqrt.pop %v1463
      %v1528 = vrsqrt.pop %v1464
      %v1529 = vrsqrt.pop %v1465
      %v1530 = vrsqrt.pop %v1466
      %v1531 = vrsqrt.pop %v1467
      %v1532 = vrsqrt.pop %v1468
      %v1533 = vrsqrt.pop %v1469
      %v1534 = vrsqrt.pop %v1470
      %v1535 = vrsqrt.pop %v1471
      %v1536 = vrsqrt.pop %v1472
      %v1537 = vrsqrt.pop %v1473
      %v1538 = vrsqrt.pop %v1474
      %v1539 = vrsqrt.pop %v1475
      %v1540 = vrsqrt.pop %v1476
      %v1541 = vrsqrt.pop %v1477
      %v1542 = vrsqrt.pop %v1478
      %v1543 = vrsqrt.pop %v1479
      %v1544 = vrsqrt.pop %v1480
      %v1545 = vrsqrt.pop %v1481
      %v1546 = vrsqrt.pop %v1482
      %v1547 = vrsqrt.pop %v1483
      %v1548 = vrsqrt.pop %v1484
      %v1549 = vrsqrt.pop %v1485
      %v1550 = vrsqrt.pop %v1486
      %v1551 = vrsqrt.pop %v1487
      %v1552 = vrsqrt.pop %v1488
      %v1553 = vrsqrt.pop %v1489
      %v1554 = vrsqrt.pop %v1490
      %v1555 = vrsqrt.pop %v1491
      %v1556 = vrsqrt.pop %v1492
      %v1557 = vrsqrt.pop %v1493
      %v1558 = vrsqrt.pop %v1494
      %v1559 = vrsqrt.pop %v1495
      %v1560 = vrsqrt.pop %v1496
      %v1561 = vrsqrt.pop %v1497
      %v1562 = vrsqrt.pop %v1498
      %v1563 = vrsqrt.pop %v1499
      %v1564 = vrsqrt.pop %v1500
      %v1565 = vrsqrt.pop %v1501
      %v1566 = vrsqrt.pop %v1502
      %v1567 = vrsqrt.pop %v1503
      %v1568 = vrsqrt.pop %v1504
      %v1569 = vrsqrt.pop %v1505
      %v1570 = vrsqrt.pop %v1506
      %v1571 = vld [vmem:[%s217] ss:$2 sm:$0xf]
      %v1573 = vlaneseq
      %v1574 = vshrl.u32 %v1573, 7
      %v1575 = vsub.s32 0, %v1574
      %v1576 = vrot.slane %v1571, %v1575
      %v1577 = vlaneseq
      %v1578 = vshrl.u32 %v1577, 7
      %v1579 = vsub.s32 1, %v1578
      %v1580 = vrot.slane %v1571, %v1579
      %v1581 = vlaneseq
      %v1582 = vshrl.u32 %v1581, 7
      %v1583 = vsub.s32 2, %v1582
      %v1584 = vrot.slane %v1571, %v1583
      %v1585 = vlaneseq
      %v1586 = vshrl.u32 %v1585, 7
      %v1587 = vsub.s32 3, %v1586
      %v1588 = vrot.slane %v1571, %v1587
      %1593 = vxpose.xlu0.b32.start [1/16] %v1576, 128
      %1594 = vxpose.xlu0.b32.cont [2/16] 0.0, 128
      %1595 = vxpose.xlu0.b32.cont [3/16] 0.0, 128
      %1596 = vxpose.xlu0.b32.cont [4/16] 0.0, 128
      %1597 = vxpose.xlu0.b32.cont [5/16] 0.0, 128
      %1598 = vxpose.xlu0.b32.cont [6/16] 0.0, 128
      %1599 = vxpose.xlu0.b32.cont [7/16] 0.0, 128
      %1600 = vxpose.xlu0.b32.cont [8/16] 0.0, 128
      %1601 = vxpose.xlu0.b32.cont [9/16] 0.0, 128
      %1602 = vxpose.xlu0.b32.cont [10/16] 0.0, 128
      %1603 = vxpose.xlu0.b32.cont [11/16] 0.0, 128
      %1604 = vxpose.xlu0.b32.cont [12/16] 0.0, 128
      %1605 = vxpose.xlu0.b32.cont [13/16] 0.0, 128
      %1606 = vxpose.xlu0.b32.cont [14/16] 0.0, 128
      %1607 = vxpose.xlu0.b32.cont [15/16] 0.0, 128
      %1608 = vxpose.xlu0.b32.end [16/16] 0.0, 128
      %v1609 = vpop.trf.xlu0
      %v1610 = vpop.trf.xlu0
      %v1611 = vpop.trf.xlu0
      %v1612 = vpop.trf.xlu0
      %v1613 = vpop.trf.xlu0
      %v1614 = vpop.trf.xlu0
      %v1615 = vpop.trf.xlu0
      %v1616 = vpop.trf.xlu0
      %v1617 = vpop.trf.xlu0
      %v1618 = vpop.trf.xlu0
      %v1619 = vpop.trf.xlu0
      %v1620 = vpop.trf.xlu0
      %v1621 = vpop.trf.xlu0
      %v1622 = vpop.trf.xlu0
      %v1623 = vpop.trf.xlu0
      %v1624 = vpop.trf.xlu0
      %1625 = vxpose.xlu0.b32.start [1/16] %v1580, 128
      %1626 = vxpose.xlu0.b32.cont [2/16] 0.0, 128
      %1627 = vxpose.xlu0.b32.cont [3/16] 0.0, 128
      %1628 = vxpose.xlu0.b32.cont [4/16] 0.0, 128
      %1629 = vxpose.xlu0.b32.cont [5/16] 0.0, 128
      %1630 = vxpose.xlu0.b32.cont [6/16] 0.0, 128
      %1631 = vxpose.xlu0.b32.cont [7/16] 0.0, 128
      %1632 = vxpose.xlu0.b32.cont [8/16] 0.0, 128
      %1633 = vxpose.xlu0.b32.cont [9/16] 0.0, 128
      %1634 = vxpose.xlu0.b32.cont [10/16] 0.0, 128
      %1635 = vxpose.xlu0.b32.cont [11/16] 0.0, 128
      %1636 = vxpose.xlu0.b32.cont [12/16] 0.0, 128
      %1637 = vxpose.xlu0.b32.cont [13/16] 0.0, 128
      %1638 = vxpose.xlu0.b32.cont [14/16] 0.0, 128
      %1639 = vxpose.xlu0.b32.cont [15/16] 0.0, 128
      %1640 = vxpose.xlu0.b32.end [16/16] 0.0, 128
      %v1641 = vpop.trf.xlu0
      %v1642 = vpop.trf.xlu0
      %v1643 = vpop.trf.xlu0
      %v1644 = vpop.trf.xlu0
      %v1645 = vpop.trf.xlu0
      %v1646 = vpop.trf.xlu0
      %v1647 = vpop.trf.xlu0
      %v1648 = vpop.trf.xlu0
      %v1649 = vpop.trf.xlu0
      %v1650 = vpop.trf.xlu0
      %v1651 = vpop.trf.xlu0
      %v1652 = vpop.trf.xlu0
      %v1653 = vpop.trf.xlu0
      %v1654 = vpop.trf.xlu0
      %v1655 = vpop.trf.xlu0
      %v1656 = vpop.trf.xlu0
      %1657 = vxpose.xlu0.b32.start [1/16] %v1584, 128
      %1658 = vxpose.xlu0.b32.cont [2/16] 0.0, 128
      %1659 = vxpose.xlu0.b32.cont [3/16] 0.0, 128
      %1660 = vxpose.xlu0.b32.cont [4/16] 0.0, 128
      %1661 = vxpose.xlu0.b32.cont [5/16] 0.0, 128
      %1662 = vxpose.xlu0.b32.cont [6/16] 0.0, 128
      %1663 = vxpose.xlu0.b32.cont [7/16] 0.0, 128
      %1664 = vxpose.xlu0.b32.cont [8/16] 0.0, 128
      %1665 = vxpose.xlu0.b32.cont [9/16] 0.0, 128
      %1666 = vxpose.xlu0.b32.cont [10/16] 0.0, 128
      %1667 = vxpose.xlu0.b32.cont [11/16] 0.0, 128
      %1668 = vxpose.xlu0.b32.cont [12/16] 0.0, 128
      %1669 = vxpose.xlu0.b32.cont [13/16] 0.0, 128
      %1670 = vxpose.xlu0.b32.cont [14/16] 0.0, 128
      %1671 = vxpose.xlu0.b32.cont [15/16] 0.0, 128
      %1672 = vxpose.xlu0.b32.end [16/16] 0.0, 128
      %v1673 = vpop.trf.xlu0
      %v1674 = vpop.trf.xlu0
      %v1675 = vpop.trf.xlu0
      %v1676 = vpop.trf.xlu0
      %v1677 = vpop.trf.xlu0
      %v1678 = vpop.trf.xlu0
      %v1679 = vpop.trf.xlu0
      %v1680 = vpop.trf.xlu0
      %v1681 = vpop.trf.xlu0
      %v1682 = vpop.trf.xlu0
      %v1683 = vpop.trf.xlu0
      %v1684 = vpop.trf.xlu0
      %v1685 = vpop.trf.xlu0
      %v1686 = vpop.trf.xlu0
      %v1687 = vpop.trf.xlu0
      %v1688 = vpop.trf.xlu0
      %1689 = vxpose.xlu0.b32.start [1/16] %v1588, 128
      %1690 = vxpose.xlu0.b32.cont [2/16] 0.0, 128
      %1691 = vxpose.xlu0.b32.cont [3/16] 0.0, 128
      %1692 = vxpose.xlu0.b32.cont [4/16] 0.0, 128
      %1693 = vxpose.xlu0.b32.cont [5/16] 0.0, 128
      %1694 = vxpose.xlu0.b32.cont [6/16] 0.0, 128
      %1695 = vxpose.xlu0.b32.cont [7/16] 0.0, 128
      %1696 = vxpose.xlu0.b32.cont [8/16] 0.0, 128
      %1697 = vxpose.xlu0.b32.cont [9/16] 0.0, 128
      %1698 = vxpose.xlu0.b32.cont [10/16] 0.0, 128
      %1699 = vxpose.xlu0.b32.cont [11/16] 0.0, 128
      %1700 = vxpose.xlu0.b32.cont [12/16] 0.0, 128
      %1701 = vxpose.xlu0.b32.cont [13/16] 0.0, 128
      %1702 = vxpose.xlu0.b32.cont [14/16] 0.0, 128
      %1703 = vxpose.xlu0.b32.cont [15/16] 0.0, 128
      %1704 = vxpose.xlu0.b32.end [16/16] 0.0, 128
      %v1705 = vpop.trf.xlu0
      %v1706 = vpop.trf.xlu0
      %v1707 = vpop.trf.xlu0
      %v1708 = vpop.trf.xlu0
      %v1709 = vpop.trf.xlu0
      %v1710 = vpop.trf.xlu0
      %v1711 = vpop.trf.xlu0
      %v1712 = vpop.trf.xlu0
      %v1713 = vpop.trf.xlu0
      %v1714 = vpop.trf.xlu0
      %v1715 = vpop.trf.xlu0
      %v1716 = vpop.trf.xlu0
      %v1717 = vpop.trf.xlu0
      %v1718 = vpop.trf.xlu0
      %v1719 = vpop.trf.xlu0
      %v1720 = vpop.trf.xlu0
      %s1721 = scalar_lea.vmem %s217, 1
      %v1722 = vld [vmem:[%s1721] ss:$2 sm:$0xf]
      %v1724 = vlaneseq
      %v1725 = vshrl.u32 %v1724, 7
      %v1726 = vsub.s32 0, %v1725
      %v1727 = vrot.slane %v1722, %v1726
      %v1728 = vlaneseq
      %v1729 = vshrl.u32 %v1728, 7
      %v1730 = vsub.s32 1, %v1729
      %v1731 = vrot.slane %v1722, %v1730
      %v1732 = vlaneseq
      %v1733 = vshrl.u32 %v1732, 7
      %v1734 = vsub.s32 2, %v1733
      %v1735 = vrot.slane %v1722, %v1734
      %v1736 = vlaneseq
      %v1737 = vshrl.u32 %v1736, 7
      %v1738 = vsub.s32 3, %v1737
      %v1739 = vrot.slane %v1722, %v1738
      %1744 = vxpose.xlu0.b32.start [1/16] %v1727, 128
      %1745 = vxpose.xlu0.b32.cont [2/16] 0.0, 128
      %1746 = vxpose.xlu0.b32.cont [3/16] 0.0, 128
      %1747 = vxpose.xlu0.b32.cont [4/16] 0.0, 128
      %1748 = vxpose.xlu0.b32.cont [5/16] 0.0, 128
      %1749 = vxpose.xlu0.b32.cont [6/16] 0.0, 128
      %1750 = vxpose.xlu0.b32.cont [7/16] 0.0, 128
      %1751 = vxpose.xlu0.b32.cont [8/16] 0.0, 128
      %1752 = vxpose.xlu0.b32.cont [9/16] 0.0, 128
      %1753 = vxpose.xlu0.b32.cont [10/16] 0.0, 128
      %1754 = vxpose.xlu0.b32.cont [11/16] 0.0, 128
      %1755 = vxpose.xlu0.b32.cont [12/16] 0.0, 128
      %1756 = vxpose.xlu0.b32.cont [13/16] 0.0, 128
      %1757 = vxpose.xlu0.b32.cont [14/16] 0.0, 128
      %1758 = vxpose.xlu0.b32.cont [15/16] 0.0, 128
      %1759 = vxpose.xlu0.b32.end [16/16] 0.0, 128
      %v1760 = vpop.trf.xlu0
      %v1761 = vpop.trf.xlu0
      %v1762 = vpop.trf.xlu0
      %v1763 = vpop.trf.xlu0
      %v1764 = vpop.trf.xlu0
      %v1765 = vpop.trf.xlu0
      %v1766 = vpop.trf.xlu0
      %v1767 = vpop.trf.xlu0
      %v1768 = vpop.trf.xlu0
      %v1769 = vpop.trf.xlu0
      %v1770 = vpop.trf.xlu0
      %v1771 = vpop.trf.xlu0
      %v1772 = vpop.trf.xlu0
      %v1773 = vpop.trf.xlu0
      %v1774 = vpop.trf.xlu0
      %v1775 = vpop.trf.xlu0
      %1776 = vxpose.xlu0.b32.start [1/16] %v1731, 128
      %1777 = vxpose.xlu0.b32.cont [2/16] 0.0, 128
      %1778 = vxpose.xlu0.b32.cont [3/16] 0.0, 128
      %1779 = vxpose.xlu0.b32.cont [4/16] 0.0, 128
      %1780 = vxpose.xlu0.b32.cont [5/16] 0.0, 128
      %1781 = vxpose.xlu0.b32.cont [6/16] 0.0, 128
      %1782 = vxpose.xlu0.b32.cont [7/16] 0.0, 128
      %1783 = vxpose.xlu0.b32.cont [8/16] 0.0, 128
      %1784 = vxpose.xlu0.b32.cont [9/16] 0.0, 128
      %1785 = vxpose.xlu0.b32.cont [10/16] 0.0, 128
      %1786 = vxpose.xlu0.b32.cont [11/16] 0.0, 128
      %1787 = vxpose.xlu0.b32.cont [12/16] 0.0, 128
      %1788 = vxpose.xlu0.b32.cont [13/16] 0.0, 128
      %1789 = vxpose.xlu0.b32.cont [14/16] 0.0, 128
      %1790 = vxpose.xlu0.b32.cont [15/16] 0.0, 128
      %1791 = vxpose.xlu0.b32.end [16/16] 0.0, 128
      %v1792 = vpop.trf.xlu0
      %v1793 = vpop.trf.xlu0
      %v1794 = vpop.trf.xlu0
      %v1795 = vpop.trf.xlu0
      %v1796 = vpop.trf.xlu0
      %v1797 = vpop.trf.xlu0
      %v1798 = vpop.trf.xlu0
      %v1799 = vpop.trf.xlu0
      %v1800 = vpop.trf.xlu0
      %v1801 = vpop.trf.xlu0
      %v1802 = vpop.trf.xlu0
      %v1803 = vpop.trf.xlu0
      %v1804 = vpop.trf.xlu0
      %v1805 = vpop.trf.xlu0
      %v1806 = vpop.trf.xlu0
      %v1807 = vpop.trf.xlu0
      %1808 = vxpose.xlu0.b32.start [1/16] %v1735, 128
      %1809 = vxpose.xlu0.b32.cont [2/16] 0.0, 128
      %1810 = vxpose.xlu0.b32.cont [3/16] 0.0, 128
      %1811 = vxpose.xlu0.b32.cont [4/16] 0.0, 128
      %1812 = vxpose.xlu0.b32.cont [5/16] 0.0, 128
      %1813 = vxpose.xlu0.b32.cont [6/16] 0.0, 128
      %1814 = vxpose.xlu0.b32.cont [7/16] 0.0, 128
      %1815 = vxpose.xlu0.b32.cont [8/16] 0.0, 128
      %1816 = vxpose.xlu0.b32.cont [9/16] 0.0, 128
      %1817 = vxpose.xlu0.b32.cont [10/16] 0.0, 128
      %1818 = vxpose.xlu0.b32.cont [11/16] 0.0, 128
      %1819 = vxpose.xlu0.b32.cont [12/16] 0.0, 128
      %1820 = vxpose.xlu0.b32.cont [13/16] 0.0, 128
      %1821 = vxpose.xlu0.b32.cont [14/16] 0.0, 128
      %1822 = vxpose.xlu0.b32.cont [15/16] 0.0, 128
      %1823 = vxpose.xlu0.b32.end [16/16] 0.0, 128
      %v1824 = vpop.trf.xlu0
      %v1825 = vpop.trf.xlu0
      %v1826 = vpop.trf.xlu0
      %v1827 = vpop.trf.xlu0
      %v1828 = vpop.trf.xlu0
      %v1829 = vpop.trf.xlu0
      %v1830 = vpop.trf.xlu0
      %v1831 = vpop.trf.xlu0
      %v1832 = vpop.trf.xlu0
      %v1833 = vpop.trf.xlu0
      %v1834 = vpop.trf.xlu0
      %v1835 = vpop.trf.xlu0
      %v1836 = vpop.trf.xlu0
      %v1837 = vpop.trf.xlu0
      %v1838 = vpop.trf.xlu0
      %v1839 = vpop.trf.xlu0
      %1840 = vxpose.xlu0.b32.start [1/16] %v1739, 128
      %1841 = vxpose.xlu0.b32.cont [2/16] 0.0, 128
      %1842 = vxpose.xlu0.b32.cont [3/16] 0.0, 128
      %1843 = vxpose.xlu0.b32.cont [4/16] 0.0, 128
      %1844 = vxpose.xlu0.b32.cont [5/16] 0.0, 128
      %1845 = vxpose.xlu0.b32.cont [6/16] 0.0, 128
      %1846 = vxpose.xlu0.b32.cont [7/16] 0.0, 128
      %1847 = vxpose.xlu0.b32.cont [8/16] 0.0, 128
      %1848 = vxpose.xlu0.b32.cont [9/16] 0.0, 128
      %1849 = vxpose.xlu0.b32.cont [10/16] 0.0, 128
      %1850 = vxpose.xlu0.b32.cont [11/16] 0.0, 128
      %1851 = vxpose.xlu0.b32.cont [12/16] 0.0, 128
      %1852 = vxpose.xlu0.b32.cont [13/16] 0.0, 128
      %1853 = vxpose.xlu0.b32.cont [14/16] 0.0, 128
      %1854 = vxpose.xlu0.b32.cont [15/16] 0.0, 128
      %1855 = vxpose.xlu0.b32.end [16/16] 0.0, 128
      %v1856 = vpop.trf.xlu0
      %v1857 = vpop.trf.xlu0
      %v1858 = vpop.trf.xlu0
      %v1859 = vpop.trf.xlu0
      %v1860 = vpop.trf.xlu0
      %v1861 = vpop.trf.xlu0
      %v1862 = vpop.trf.xlu0
      %v1863 = vpop.trf.xlu0
      %v1864 = vpop.trf.xlu0
      %v1865 = vpop.trf.xlu0
      %v1866 = vpop.trf.xlu0
      %v1867 = vpop.trf.xlu0
      %v1868 = vpop.trf.xlu0
      %v1869 = vpop.trf.xlu0
      %v1870 = vpop.trf.xlu0
      %v1871 = vpop.trf.xlu0
      %v1872 = vmul.f32 %v1507, %v1609
      %v1873 = vmul.f32 %v1508, %v1610
      %v1874 = vmul.f32 %v1509, %v1611
      %v1875 = vmul.f32 %v1510, %v1612
      %v1876 = vmul.f32 %v1511, %v1613
      %v1877 = vmul.f32 %v1512, %v1614
      %v1878 = vmul.f32 %v1513, %v1615
      %v1879 = vmul.f32 %v1514, %v1616
      %v1880 = vmul.f32 %v1515, %v1617
      %v1881 = vmul.f32 %v1516, %v1618
      %v1882 = vmul.f32 %v1517, %v1619
      %v1883 = vmul.f32 %v1518, %v1620
      %v1884 = vmul.f32 %v1519, %v1621
      %v1885 = vmul.f32 %v1520, %v1622
      %v1886 = vmul.f32 %v1521, %v1623
      %v1887 = vmul.f32 %v1522, %v1624
      %v1888 = vmul.f32 %v1523, %v1641
      %v1889 = vmul.f32 %v1524, %v1642
      %v1890 = vmul.f32 %v1525, %v1643
      %v1891 = vmul.f32 %v1526, %v1644
      %v1892 = vmul.f32 %v1527, %v1645
      %v1893 = vmul.f32 %v1528, %v1646
      %v1894 = vmul.f32 %v1529, %v1647
      %v1895 = vmul.f32 %v1530, %v1648
      %v1896 = vmul.f32 %v1531, %v1649
      %v1897 = vmul.f32 %v1532, %v1650
      %v1898 = vmul.f32 %v1533, %v1651
      %v1899 = vmul.f32 %v1534, %v1652
      %v1900 = vmul.f32 %v1535, %v1653
      %v1901 = vmul.f32 %v1536, %v1654
      %v1902 = vmul.f32 %v1537, %v1655
      %v1903 = vmul.f32 %v1538, %v1656
      %v1904 = vmul.f32 %v1539, %v1673
      %v1905 = vmul.f32 %v1540, %v1674
      %v1906 = vmul.f32 %v1541, %v1675
      %v1907 = vmul.f32 %v1542, %v1676
      %v1908 = vmul.f32 %v1543, %v1677
      %v1909 = vmul.f32 %v1544, %v1678
      %v1910 = vmul.f32 %v1545, %v1679
      %v1911 = vmul.f32 %v1546, %v1680
      %v1912 = vmul.f32 %v1547, %v1681
      %v1913 = vmul.f32 %v1548, %v1682
      %v1914 = vmul.f32 %v1549, %v1683
      %v1915 = vmul.f32 %v1550, %v1684
      %v1916 = vmul.f32 %v1551, %v1685
      %v1917 = vmul.f32 %v1552, %v1686
      %v1918 = vmul.f32 %v1553, %v1687
      %v1919 = vmul.f32 %v1554, %v1688
      %v1920 = vmul.f32 %v1555, %v1705
      %v1921 = vmul.f32 %v1556, %v1706
      %v1922 = vmul.f32 %v1557, %v1707
      %v1923 = vmul.f32 %v1558, %v1708
      %v1924 = vmul.f32 %v1559, %v1709
      %v1925 = vmul.f32 %v1560, %v1710
      %v1926 = vmul.f32 %v1561, %v1711
      %v1927 = vmul.f32 %v1562, %v1712
      %v1928 = vmul.f32 %v1563, %v1713
      %v1929 = vmul.f32 %v1564, %v1714
      %v1930 = vmul.f32 %v1565, %v1715
      %v1931 = vmul.f32 %v1566, %v1716
      %v1932 = vmul.f32 %v1567, %v1717
      %v1933 = vmul.f32 %v1568, %v1718
      %v1934 = vmul.f32 %v1569, %v1719
      %v1935 = vmul.f32 %v1570, %v1720
      %v1936 = vmul.f32 %v1123, %v1872
      %v1937 = vmul.f32 %v1124, %v1873
      %v1938 = vmul.f32 %v1125, %v1874
      %v1939 = vmul.f32 %v1126, %v1875
      %v1940 = vmul.f32 %v1127, %v1876
      %v1941 = vmul.f32 %v1128, %v1877
      %v1942 = vmul.f32 %v1129, %v1878
      %v1943 = vmul.f32 %v1130, %v1879
      %v1944 = vmul.f32 %v1131, %v1880
      %v1945 = vmul.f32 %v1132, %v1881
      %v1946 = vmul.f32 %v1133, %v1882
      %v1947 = vmul.f32 %v1134, %v1883
      %v1948 = vmul.f32 %v1135, %v1884
      %v1949 = vmul.f32 %v1136, %v1885
      %v1950 = vmul.f32 %v1137, %v1886
      %v1951 = vmul.f32 %v1138, %v1887
      %v1952 = vmul.f32 %v1139, %v1888
      %v1953 = vmul.f32 %v1140, %v1889
      %v1954 = vmul.f32 %v1141, %v1890
      %v1955 = vmul.f32 %v1142, %v1891
      %v1956 = vmul.f32 %v1143, %v1892
      %v1957 = vmul.f32 %v1144, %v1893
      %v1958 = vmul.f32 %v1145, %v1894
      %v1959 = vmul.f32 %v1146, %v1895
      %v1960 = vmul.f32 %v1147, %v1896
      %v1961 = vmul.f32 %v1148, %v1897
      %v1962 = vmul.f32 %v1149, %v1898
      %v1963 = vmul.f32 %v1150, %v1899
      %v1964 = vmul.f32 %v1151, %v1900
      %v1965 = vmul.f32 %v1152, %v1901
      %v1966 = vmul.f32 %v1153, %v1902
      %v1967 = vmul.f32 %v1154, %v1903
      %v1968 = vmul.f32 %v1155, %v1904
      %v1969 = vmul.f32 %v1156, %v1905
      %v1970 = vmul.f32 %v1157, %v1906
      %v1971 = vmul.f32 %v1158, %v1907
      %v1972 = vmul.f32 %v1159, %v1908
      %v1973 = vmul.f32 %v1160, %v1909
      %v1974 = vmul.f32 %v1161, %v1910
      %v1975 = vmul.f32 %v1162, %v1911
      %v1976 = vmul.f32 %v1163, %v1912
      %v1977 = vmul.f32 %v1164, %v1913
      %v1978 = vmul.f32 %v1165, %v1914
      %v1979 = vmul.f32 %v1166, %v1915
      %v1980 = vmul.f32 %v1167, %v1916
      %v1981 = vmul.f32 %v1168, %v1917
      %v1982 = vmul.f32 %v1169, %v1918
      %v1983 = vmul.f32 %v1170, %v1919
      %v1984 = vmul.f32 %v1171, %v1920
      %v1985 = vmul.f32 %v1172, %v1921
      %v1986 = vmul.f32 %v1173, %v1922
      %v1987 = vmul.f32 %v1174, %v1923
      %v1988 = vmul.f32 %v1175, %v1924
      %v1989 = vmul.f32 %v1176, %v1925
      %v1990 = vmul.f32 %v1177, %v1926
      %v1991 = vmul.f32 %v1178, %v1927
      %v1992 = vmul.f32 %v1179, %v1928
      %v1993 = vmul.f32 %v1180, %v1929
      %v1994 = vmul.f32 %v1181, %v1930
      %v1995 = vmul.f32 %v1182, %v1931
      %v1996 = vmul.f32 %v1183, %v1932
      %v1997 = vmul.f32 %v1184, %v1933
      %v1998 = vmul.f32 %v1185, %v1934
      %v1999 = vmul.f32 %v1186, %v1935
      %v2000 = vsub.f32 %v1760, %v1936
      %v2001 = vsub.f32 %v1761, %v1937
      %v2002 = vsub.f32 %v1762, %v1938
      %v2003 = vsub.f32 %v1763, %v1939
      %v2004 = vsub.f32 %v1764, %v1940
      %v2005 = vsub.f32 %v1765, %v1941
      %v2006 = vsub.f32 %v1766, %v1942
      %v2007 = vsub.f32 %v1767, %v1943
      %v2008 = vsub.f32 %v1768, %v1944
      %v2009 = vsub.f32 %v1769, %v1945
      %v2010 = vsub.f32 %v1770, %v1946
      %v2011 = vsub.f32 %v1771, %v1947
      %v2012 = vsub.f32 %v1772, %v1948
      %v2013 = vsub.f32 %v1773, %v1949
      %v2014 = vsub.f32 %v1774, %v1950
      %v2015 = vsub.f32 %v1775, %v1951
      %v2016 = vsub.f32 %v1792, %v1952
      %v2017 = vsub.f32 %v1793, %v1953
      %v2018 = vsub.f32 %v1794, %v1954
      %v2019 = vsub.f32 %v1795, %v1955
      %v2020 = vsub.f32 %v1796, %v1956
      %v2021 = vsub.f32 %v1797, %v1957
      %v2022 = vsub.f32 %v1798, %v1958
      %v2023 = vsub.f32 %v1799, %v1959
      %v2024 = vsub.f32 %v1800, %v1960
      %v2025 = vsub.f32 %v1801, %v1961
      %v2026 = vsub.f32 %v1802, %v1962
      %v2027 = vsub.f32 %v1803, %v1963
      %v2028 = vsub.f32 %v1804, %v1964
      %v2029 = vsub.f32 %v1805, %v1965
      %v2030 = vsub.f32 %v1806, %v1966
      %v2031 = vsub.f32 %v1807, %v1967
      %v2032 = vsub.f32 %v1824, %v1968
      %v2033 = vsub.f32 %v1825, %v1969
      %v2034 = vsub.f32 %v1826, %v1970
      %v2035 = vsub.f32 %v1827, %v1971
      %v2036 = vsub.f32 %v1828, %v1972
      %v2037 = vsub.f32 %v1829, %v1973
      %v2038 = vsub.f32 %v1830, %v1974
      %v2039 = vsub.f32 %v1831, %v1975
      %v2040 = vsub.f32 %v1832, %v1976
      %v2041 = vsub.f32 %v1833, %v1977
      %v2042 = vsub.f32 %v1834, %v1978
      %v2043 = vsub.f32 %v1835, %v1979
      %v2044 = vsub.f32 %v1836, %v1980
      %v2045 = vsub.f32 %v1837, %v1981
      %v2046 = vsub.f32 %v1838, %v1982
      %v2047 = vsub.f32 %v1839, %v1983
      %v2048 = vsub.f32 %v1856, %v1984
      %v2049 = vsub.f32 %v1857, %v1985
      %v2050 = vsub.f32 %v1858, %v1986
      %v2051 = vsub.f32 %v1859, %v1987
      %v2052 = vsub.f32 %v1860, %v1988
      %v2053 = vsub.f32 %v1861, %v1989
      %v2054 = vsub.f32 %v1862, %v1990
      %v2055 = vsub.f32 %v1863, %v1991
      %v2056 = vsub.f32 %v1864, %v1992
      %v2057 = vsub.f32 %v1865, %v1993
      %v2058 = vsub.f32 %v1866, %v1994
      %v2059 = vsub.f32 %v1867, %v1995
      %v2060 = vsub.f32 %v1868, %v1996
      %v2061 = vsub.f32 %v1869, %v1997
      %v2062 = vsub.f32 %v1870, %v1998
      %v2063 = vsub.f32 %v1871, %v1999
      %2065 = vset.pattern.permute.xlu0 0
      %2066 = vperm.xlu0 %2065, %v1872
      %v2067 = vpop.permute.xlu0 %2066
      %2070 = vset.pattern.permute.xlu0 0
      %2071 = vperm.xlu0 %2070, %v1873
      %v2072 = vpop.permute.xlu0 %2071
      %2075 = vset.pattern.permute.xlu0 0
      %2076 = vperm.xlu0 %2075, %v1874
      %v2077 = vpop.permute.xlu0 %2076
      %2080 = vset.pattern.permute.xlu0 0
      %2081 = vperm.xlu0 %2080, %v1875
      %v2082 = vpop.permute.xlu0 %2081
      %2085 = vset.pattern.permute.xlu0 0
      %2086 = vperm.xlu0 %2085, %v1876
      %v2087 = vpop.permute.xlu0 %2086
      %2090 = vset.pattern.permute.xlu0 0
      %2091 = vperm.xlu0 %2090, %v1877
      %v2092 = vpop.permute.xlu0 %2091
      %2095 = vset.pattern.permute.xlu0 0
      %2096 = vperm.xlu0 %2095, %v1878
      %v2097 = vpop.permute.xlu0 %2096
      %2100 = vset.pattern.permute.xlu0 0
      %2101 = vperm.xlu0 %2100, %v1879
      %v2102 = vpop.permute.xlu0 %2101
      %2105 = vset.pattern.permute.xlu0 0
      %2106 = vperm.xlu0 %2105, %v1880
      %v2107 = vpop.permute.xlu0 %2106
      %2110 = vset.pattern.permute.xlu0 0
      %2111 = vperm.xlu0 %2110, %v1881
      %v2112 = vpop.permute.xlu0 %2111
      %2115 = vset.pattern.permute.xlu0 0
      %2116 = vperm.xlu0 %2115, %v1882
      %v2117 = vpop.permute.xlu0 %2116
      %2120 = vset.pattern.permute.xlu0 0
      %2121 = vperm.xlu0 %2120, %v1883
      %v2122 = vpop.permute.xlu0 %2121
      %2125 = vset.pattern.permute.xlu0 0
      %2126 = vperm.xlu0 %2125, %v1884
      %v2127 = vpop.permute.xlu0 %2126
      %2130 = vset.pattern.permute.xlu0 0
      %2131 = vperm.xlu0 %2130, %v1885
      %v2132 = vpop.permute.xlu0 %2131
      %2135 = vset.pattern.permute.xlu0 0
      %2136 = vperm.xlu0 %2135, %v1886
      %v2137 = vpop.permute.xlu0 %2136
      %2140 = vset.pattern.permute.xlu0 0
      %2141 = vperm.xlu0 %2140, %v1887
      %v2142 = vpop.permute.xlu0 %2141
      %2145 = vset.pattern.permute.xlu0 0
      %2146 = vperm.xlu0 %2145, %v1888
      %v2147 = vpop.permute.xlu0 %2146
      %2150 = vset.pattern.permute.xlu0 0
      %2151 = vperm.xlu0 %2150, %v1889
      %v2152 = vpop.permute.xlu0 %2151
      %2155 = vset.pattern.permute.xlu0 0
      %2156 = vperm.xlu0 %2155, %v1890
      %v2157 = vpop.permute.xlu0 %2156
      %2160 = vset.pattern.permute.xlu0 0
      %2161 = vperm.xlu0 %2160, %v1891
      %v2162 = vpop.permute.xlu0 %2161
      %2165 = vset.pattern.permute.xlu0 0
      %2166 = vperm.xlu0 %2165, %v1892
      %v2167 = vpop.permute.xlu0 %2166
      %2170 = vset.pattern.permute.xlu0 0
      %2171 = vperm.xlu0 %2170, %v1893
      %v2172 = vpop.permute.xlu0 %2171
      %2175 = vset.pattern.permute.xlu0 0
      %2176 = vperm.xlu0 %2175, %v1894
      %v2177 = vpop.permute.xlu0 %2176
      %2180 = vset.pattern.permute.xlu0 0
      %2181 = vperm.xlu0 %2180, %v1895
      %v2182 = vpop.permute.xlu0 %2181
      %2185 = vset.pattern.permute.xlu0 0
      %2186 = vperm.xlu0 %2185, %v1896
      %v2187 = vpop.permute.xlu0 %2186
      %2190 = vset.pattern.permute.xlu0 0
      %2191 = vperm.xlu0 %2190, %v1897
      %v2192 = vpop.permute.xlu0 %2191
      %2195 = vset.pattern.permute.xlu0 0
      %2196 = vperm.xlu0 %2195, %v1898
      %v2197 = vpop.permute.xlu0 %2196
      %2200 = vset.pattern.permute.xlu0 0
      %2201 = vperm.xlu0 %2200, %v1899
      %v2202 = vpop.permute.xlu0 %2201
      %2205 = vset.pattern.permute.xlu0 0
      %2206 = vperm.xlu0 %2205, %v1900
      %v2207 = vpop.permute.xlu0 %2206
      %2210 = vset.pattern.permute.xlu0 0
      %2211 = vperm.xlu0 %2210, %v1901
      %v2212 = vpop.permute.xlu0 %2211
      %2215 = vset.pattern.permute.xlu0 0
      %2216 = vperm.xlu0 %2215, %v1902
      %v2217 = vpop.permute.xlu0 %2216
      %2220 = vset.pattern.permute.xlu0 0
      %2221 = vperm.xlu0 %2220, %v1903
      %v2222 = vpop.permute.xlu0 %2221
      %2225 = vset.pattern.permute.xlu0 0
      %2226 = vperm.xlu0 %2225, %v1904
      %v2227 = vpop.permute.xlu0 %2226
      %2230 = vset.pattern.permute.xlu0 0
      %2231 = vperm.xlu0 %2230, %v1905
      %v2232 = vpop.permute.xlu0 %2231
      %2235 = vset.pattern.permute.xlu0 0
      %2236 = vperm.xlu0 %2235, %v1906
      %v2237 = vpop.permute.xlu0 %2236
      %2240 = vset.pattern.permute.xlu0 0
      %2241 = vperm.xlu0 %2240, %v1907
      %v2242 = vpop.permute.xlu0 %2241
      %2245 = vset.pattern.permute.xlu0 0
      %2246 = vperm.xlu0 %2245, %v1908
      %v2247 = vpop.permute.xlu0 %2246
      %2250 = vset.pattern.permute.xlu0 0
      %2251 = vperm.xlu0 %2250, %v1909
      %v2252 = vpop.permute.xlu0 %2251
      %2255 = vset.pattern.permute.xlu0 0
      %2256 = vperm.xlu0 %2255, %v1910
      %v2257 = vpop.permute.xlu0 %2256
      %2260 = vset.pattern.permute.xlu0 0
      %2261 = vperm.xlu0 %2260, %v1911
      %v2262 = vpop.permute.xlu0 %2261
      %2265 = vset.pattern.permute.xlu0 0
      %2266 = vperm.xlu0 %2265, %v1912
      %v2267 = vpop.permute.xlu0 %2266
      %2270 = vset.pattern.permute.xlu0 0
      %2271 = vperm.xlu0 %2270, %v1913
      %v2272 = vpop.permute.xlu0 %2271
      %2275 = vset.pattern.permute.xlu0 0
      %2276 = vperm.xlu0 %2275, %v1914
      %v2277 = vpop.permute.xlu0 %2276
      %2280 = vset.pattern.permute.xlu0 0
      %2281 = vperm.xlu0 %2280, %v1915
      %v2282 = vpop.permute.xlu0 %2281
      %2285 = vset.pattern.permute.xlu0 0
      %2286 = vperm.xlu0 %2285, %v1916
      %v2287 = vpop.permute.xlu0 %2286
      %2290 = vset.pattern.permute.xlu0 0
      %2291 = vperm.xlu0 %2290, %v1917
      %v2292 = vpop.permute.xlu0 %2291
      %2295 = vset.pattern.permute.xlu0 0
      %2296 = vperm.xlu0 %2295, %v1918
      %v2297 = vpop.permute.xlu0 %2296
      %2300 = vset.pattern.permute.xlu0 0
      %2301 = vperm.xlu0 %2300, %v1919
      %v2302 = vpop.permute.xlu0 %2301
      %2305 = vset.pattern.permute.xlu0 0
      %2306 = vperm.xlu0 %2305, %v1920
      %v2307 = vpop.permute.xlu0 %2306
      %2310 = vset.pattern.permute.xlu0 0
      %2311 = vperm.xlu0 %2310, %v1921
      %v2312 = vpop.permute.xlu0 %2311
      %2315 = vset.pattern.permute.xlu0 0
      %2316 = vperm.xlu0 %2315, %v1922
      %v2317 = vpop.permute.xlu0 %2316
      %2320 = vset.pattern.permute.xlu0 0
      %2321 = vperm.xlu0 %2320, %v1923
      %v2322 = vpop.permute.xlu0 %2321
      %2325 = vset.pattern.permute.xlu0 0
      %2326 = vperm.xlu0 %2325, %v1924
      %v2327 = vpop.permute.xlu0 %2326
      %2330 = vset.pattern.permute.xlu0 0
      %2331 = vperm.xlu0 %2330, %v1925
      %v2332 = vpop.permute.xlu0 %2331
      %2335 = vset.pattern.permute.xlu0 0
      %2336 = vperm.xlu0 %2335, %v1926
      %v2337 = vpop.permute.xlu0 %2336
      %2340 = vset.pattern.permute.xlu0 0
      %2341 = vperm.xlu0 %2340, %v1927
      %v2342 = vpop.permute.xlu0 %2341
      %2345 = vset.pattern.permute.xlu0 0
      %2346 = vperm.xlu0 %2345, %v1928
      %v2347 = vpop.permute.xlu0 %2346
      %2350 = vset.pattern.permute.xlu0 0
      %2351 = vperm.xlu0 %2350, %v1929
      %v2352 = vpop.permute.xlu0 %2351
      %2355 = vset.pattern.permute.xlu0 0
      %2356 = vperm.xlu0 %2355, %v1930
      %v2357 = vpop.permute.xlu0 %2356
      %2360 = vset.pattern.permute.xlu0 0
      %2361 = vperm.xlu0 %2360, %v1931
      %v2362 = vpop.permute.xlu0 %2361
      %2365 = vset.pattern.permute.xlu0 0
      %2366 = vperm.xlu0 %2365, %v1932
      %v2367 = vpop.permute.xlu0 %2366
      %2370 = vset.pattern.permute.xlu0 0
      %2371 = vperm.xlu0 %2370, %v1933
      %v2372 = vpop.permute.xlu0 %2371
      %2375 = vset.pattern.permute.xlu0 0
      %2376 = vperm.xlu0 %2375, %v1934
      %v2377 = vpop.permute.xlu0 %2376
      %2380 = vset.pattern.permute.xlu0 0
      %2381 = vperm.xlu0 %2380, %v1935
      %v2382 = vpop.permute.xlu0 %2381
      %v2384 = vmul.f32 %v226, %v2067
      %v2385 = vmul.f32 %v227, %v2067
      %v2386 = vmul.f32 %v228, %v2072
      %v2387 = vmul.f32 %v229, %v2072
      %v2388 = vmul.f32 %v230, %v2077
      %v2389 = vmul.f32 %v231, %v2077
      %v2390 = vmul.f32 %v232, %v2082
      %v2391 = vmul.f32 %v233, %v2082
      %v2392 = vmul.f32 %v234, %v2087
      %v2393 = vmul.f32 %v235, %v2087
      %v2394 = vmul.f32 %v236, %v2092
      %v2395 = vmul.f32 %v237, %v2092
      %v2396 = vmul.f32 %v238, %v2097
      %v2397 = vmul.f32 %v239, %v2097
      %v2398 = vmul.f32 %v240, %v2102
      %v2399 = vmul.f32 %v241, %v2102
      %v2400 = vmul.f32 %v242, %v2107
      %v2401 = vmul.f32 %v243, %v2107
      %v2402 = vmul.f32 %v244, %v2112
      %v2403 = vmul.f32 %v245, %v2112
      %v2404 = vmul.f32 %v246, %v2117
      %v2405 = vmul.f32 %v247, %v2117
      %v2406 = vmul.f32 %v248, %v2122
      %v2407 = vmul.f32 %v249, %v2122
      %v2408 = vmul.f32 %v250, %v2127
      %v2409 = vmul.f32 %v251, %v2127
      %v2410 = vmul.f32 %v252, %v2132
      %v2411 = vmul.f32 %v253, %v2132
      %v2412 = vmul.f32 %v254, %v2137
      %v2413 = vmul.f32 %v255, %v2137
      %v2414 = vmul.f32 %v256, %v2142
      %v2415 = vmul.f32 %v257, %v2142
      %v2416 = vmul.f32 %v258, %v2147
      %v2417 = vmul.f32 %v259, %v2147
      %v2418 = vmul.f32 %v260, %v2152
      %v2419 = vmul.f32 %v261, %v2152
      %v2420 = vmul.f32 %v262, %v2157
      %v2421 = vmul.f32 %v263, %v2157
      %v2422 = vmul.f32 %v264, %v2162
      %v2423 = vmul.f32 %v265, %v2162
      %v2424 = vmul.f32 %v266, %v2167
      %v2425 = vmul.f32 %v267, %v2167
      %v2426 = vmul.f32 %v268, %v2172
      %v2427 = vmul.f32 %v269, %v2172
      %v2428 = vmul.f32 %v270, %v2177
      %v2429 = vmul.f32 %v271, %v2177
      %v2430 = vmul.f32 %v272, %v2182
      %v2431 = vmul.f32 %v273, %v2182
      %v2432 = vmul.f32 %v274, %v2187
      %v2433 = vmul.f32 %v275, %v2187
      %v2434 = vmul.f32 %v276, %v2192
      %v2435 = vmul.f32 %v277, %v2192
      %v2436 = vmul.f32 %v278, %v2197
      %v2437 = vmul.f32 %v279, %v2197
      %v2438 = vmul.f32 %v280, %v2202
      %v2439 = vmul.f32 %v281, %v2202
      %v2440 = vmul.f32 %v282, %v2207
      %v2441 = vmul.f32 %v283, %v2207
      %v2442 = vmul.f32 %v284, %v2212
      %v2443 = vmul.f32 %v285, %v2212
      %v2444 = vmul.f32 %v286, %v2217
      %v2445 = vmul.f32 %v287, %v2217
      %v2446 = vmul.f32 %v288, %v2222
      %v2447 = vmul.f32 %v289, %v2222
      %v2448 = vmul.f32 %v290, %v2227
      %v2449 = vmul.f32 %v291, %v2227
      %v2450 = vmul.f32 %v292, %v2232
      %v2451 = vmul.f32 %v293, %v2232
      %v2452 = vmul.f32 %v294, %v2237
      %v2453 = vmul.f32 %v295, %v2237
      %v2454 = vmul.f32 %v296, %v2242
      %v2455 = vmul.f32 %v297, %v2242
      %v2456 = vmul.f32 %v298, %v2247
      %v2457 = vmul.f32 %v299, %v2247
      %v2458 = vmul.f32 %v300, %v2252
      %v2459 = vmul.f32 %v301, %v2252
      %v2460 = vmul.f32 %v302, %v2257
      %v2461 = vmul.f32 %v303, %v2257
      %v2462 = vmul.f32 %v304, %v2262
      %v2463 = vmul.f32 %v305, %v2262
      %v2464 = vmul.f32 %v306, %v2267
      %v2465 = vmul.f32 %v307, %v2267
      %v2466 = vmul.f32 %v308, %v2272
      %v2467 = vmul.f32 %v309, %v2272
      %v2468 = vmul.f32 %v310, %v2277
      %v2469 = vmul.f32 %v311, %v2277
      %v2470 = vmul.f32 %v312, %v2282
      %v2471 = vmul.f32 %v313, %v2282
      %v2472 = vmul.f32 %v314, %v2287
      %v2473 = vmul.f32 %v315, %v2287
      %v2474 = vmul.f32 %v316, %v2292
      %v2475 = vmul.f32 %v317, %v2292
      %v2476 = vmul.f32 %v318, %v2297
      %v2477 = vmul.f32 %v319, %v2297
      %v2478 = vmul.f32 %v320, %v2302
      %v2479 = vmul.f32 %v321, %v2302
      %v2480 = vmul.f32 %v322, %v2307
      %v2481 = vmul.f32 %v323, %v2307
      %v2482 = vmul.f32 %v324, %v2312
      %v2483 = vmul.f32 %v325, %v2312
      %v2484 = vmul.f32 %v326, %v2317
      %v2485 = vmul.f32 %v327, %v2317
      %v2486 = vmul.f32 %v328, %v2322
      %v2487 = vmul.f32 %v329, %v2322
      %v2488 = vmul.f32 %v330, %v2327
      %v2489 = vmul.f32 %v331, %v2327
      %v2490 = vmul.f32 %v332, %v2332
      %v2491 = vmul.f32 %v333, %v2332
      %v2492 = vmul.f32 %v334, %v2337
      %v2493 = vmul.f32 %v335, %v2337
      %v2494 = vmul.f32 %v336, %v2342
      %v2495 = vmul.f32 %v337, %v2342
      %v2496 = vmul.f32 %v338, %v2347
      %v2497 = vmul.f32 %v339, %v2347
      %v2498 = vmul.f32 %v340, %v2352
      %v2499 = vmul.f32 %v341, %v2352
      %v2500 = vmul.f32 %v342, %v2357
      %v2501 = vmul.f32 %v343, %v2357
      %v2502 = vmul.f32 %v344, %v2362
      %v2503 = vmul.f32 %v345, %v2362
      %v2504 = vmul.f32 %v346, %v2367
      %v2505 = vmul.f32 %v347, %v2367
      %v2506 = vmul.f32 %v348, %v2372
      %v2507 = vmul.f32 %v349, %v2372
      %v2508 = vmul.f32 %v350, %v2377
      %v2509 = vmul.f32 %v351, %v2377
      %v2510 = vmul.f32 %v352, %v2382
      %v2511 = vmul.f32 %v353, %v2382
      %2513 = vset.pattern.permute.xlu0 0
      %2514 = vperm.xlu0 %2513, %v2000
      %v2515 = vpop.permute.xlu0 %2514
      %2518 = vset.pattern.permute.xlu0 0
      %2519 = vperm.xlu0 %2518, %v2001
      %v2520 = vpop.permute.xlu0 %2519
      %2523 = vset.pattern.permute.xlu0 0
      %2524 = vperm.xlu0 %2523, %v2002
      %v2525 = vpop.permute.xlu0 %2524
      %2528 = vset.pattern.permute.xlu0 0
      %2529 = vperm.xlu0 %2528, %v2003
      %v2530 = vpop.permute.xlu0 %2529
      %2533 = vset.pattern.permute.xlu0 0
      %2534 = vperm.xlu0 %2533, %v2004
      %v2535 = vpop.permute.xlu0 %2534
      %2538 = vset.pattern.permute.xlu0 0
      %2539 = vperm.xlu0 %2538, %v2005
      %v2540 = vpop.permute.xlu0 %2539
      %2543 = vset.pattern.permute.xlu0 0
      %2544 = vperm.xlu0 %2543, %v2006
      %v2545 = vpop.permute.xlu0 %2544
      %2548 = vset.pattern.permute.xlu0 0
      %2549 = vperm.xlu0 %2548, %v2007
      %v2550 = vpop.permute.xlu0 %2549
      %2553 = vset.pattern.permute.xlu0 0
      %2554 = vperm.xlu0 %2553, %v2008
      %v2555 = vpop.permute.xlu0 %2554
      %2558 = vset.pattern.permute.xlu0 0
      %2559 = vperm.xlu0 %2558, %v2009
      %v2560 = vpop.permute.xlu0 %2559
      %2563 = vset.pattern.permute.xlu0 0
      %2564 = vperm.xlu0 %2563, %v2010
      %v2565 = vpop.permute.xlu0 %2564
      %2568 = vset.pattern.permute.xlu0 0
      %2569 = vperm.xlu0 %2568, %v2011
      %v2570 = vpop.permute.xlu0 %2569
      %2573 = vset.pattern.permute.xlu0 0
      %2574 = vperm.xlu0 %2573, %v2012
      %v2575 = vpop.permute.xlu0 %2574
      %2578 = vset.pattern.permute.xlu0 0
      %2579 = vperm.xlu0 %2578, %v2013
      %v2580 = vpop.permute.xlu0 %2579
      %2583 = vset.pattern.permute.xlu0 0
      %2584 = vperm.xlu0 %2583, %v2014
      %v2585 = vpop.permute.xlu0 %2584
      %2588 = vset.pattern.permute.xlu0 0
      %2589 = vperm.xlu0 %2588, %v2015
      %v2590 = vpop.permute.xlu0 %2589
      %2593 = vset.pattern.permute.xlu0 0
      %2594 = vperm.xlu0 %2593, %v2016
      %v2595 = vpop.permute.xlu0 %2594
      %2598 = vset.pattern.permute.xlu0 0
      %2599 = vperm.xlu0 %2598, %v2017
      %v2600 = vpop.permute.xlu0 %2599
      %2603 = vset.pattern.permute.xlu0 0
      %2604 = vperm.xlu0 %2603, %v2018
      %v2605 = vpop.permute.xlu0 %2604
      %2608 = vset.pattern.permute.xlu0 0
      %2609 = vperm.xlu0 %2608, %v2019
      %v2610 = vpop.permute.xlu0 %2609
      %2613 = vset.pattern.permute.xlu0 0
      %2614 = vperm.xlu0 %2613, %v2020
      %v2615 = vpop.permute.xlu0 %2614
      %2618 = vset.pattern.permute.xlu0 0
      %2619 = vperm.xlu0 %2618, %v2021
      %v2620 = vpop.permute.xlu0 %2619
      %2623 = vset.pattern.permute.xlu0 0
      %2624 = vperm.xlu0 %2623, %v2022
      %v2625 = vpop.permute.xlu0 %2624
      %2628 = vset.pattern.permute.xlu0 0
      %2629 = vperm.xlu0 %2628, %v2023
      %v2630 = vpop.permute.xlu0 %2629
      %2633 = vset.pattern.permute.xlu0 0
      %2634 = vperm.xlu0 %2633, %v2024
      %v2635 = vpop.permute.xlu0 %2634
      %2638 = vset.pattern.permute.xlu0 0
      %2639 = vperm.xlu0 %2638, %v2025
      %v2640 = vpop.permute.xlu0 %2639
      %2643 = vset.pattern.permute.xlu0 0
      %2644 = vperm.xlu0 %2643, %v2026
      %v2645 = vpop.permute.xlu0 %2644
      %2648 = vset.pattern.permute.xlu0 0
      %2649 = vperm.xlu0 %2648, %v2027
      %v2650 = vpop.permute.xlu0 %2649
      %2653 = vset.pattern.permute.xlu0 0
      %2654 = vperm.xlu0 %2653, %v2028
      %v2655 = vpop.permute.xlu0 %2654
      %2658 = vset.pattern.permute.xlu0 0
      %2659 = vperm.xlu0 %2658, %v2029
      %v2660 = vpop.permute.xlu0 %2659
      %2663 = vset.pattern.permute.xlu0 0
      %2664 = vperm.xlu0 %2663, %v2030
      %v2665 = vpop.permute.xlu0 %2664
      %2668 = vset.pattern.permute.xlu0 0
      %2669 = vperm.xlu0 %2668, %v2031
      %v2670 = vpop.permute.xlu0 %2669
      %2673 = vset.pattern.permute.xlu0 0
      %2674 = vperm.xlu0 %2673, %v2032
      %v2675 = vpop.permute.xlu0 %2674
      %2678 = vset.pattern.permute.xlu0 0
      %2679 = vperm.xlu0 %2678, %v2033
      %v2680 = vpop.permute.xlu0 %2679
      %2683 = vset.pattern.permute.xlu0 0
      %2684 = vperm.xlu0 %2683, %v2034
      %v2685 = vpop.permute.xlu0 %2684
      %2688 = vset.pattern.permute.xlu0 0
      %2689 = vperm.xlu0 %2688, %v2035
      %v2690 = vpop.permute.xlu0 %2689
      %2693 = vset.pattern.permute.xlu0 0
      %2694 = vperm.xlu0 %2693, %v2036
      %v2695 = vpop.permute.xlu0 %2694
      %2698 = vset.pattern.permute.xlu0 0
      %2699 = vperm.xlu0 %2698, %v2037
      %v2700 = vpop.permute.xlu0 %2699
      %2703 = vset.pattern.permute.xlu0 0
      %2704 = vperm.xlu0 %2703, %v2038
      %v2705 = vpop.permute.xlu0 %2704
      %2708 = vset.pattern.permute.xlu0 0
      %2709 = vperm.xlu0 %2708, %v2039
      %v2710 = vpop.permute.xlu0 %2709
      %2713 = vset.pattern.permute.xlu0 0
      %2714 = vperm.xlu0 %2713, %v2040
      %v2715 = vpop.permute.xlu0 %2714
      %2718 = vset.pattern.permute.xlu0 0
      %2719 = vperm.xlu0 %2718, %v2041
      %v2720 = vpop.permute.xlu0 %2719
      %2723 = vset.pattern.permute.xlu0 0
      %2724 = vperm.xlu0 %2723, %v2042
      %v2725 = vpop.permute.xlu0 %2724
      %2728 = vset.pattern.permute.xlu0 0
      %2729 = vperm.xlu0 %2728, %v2043
      %v2730 = vpop.permute.xlu0 %2729
      %2733 = vset.pattern.permute.xlu0 0
      %2734 = vperm.xlu0 %2733, %v2044
      %v2735 = vpop.permute.xlu0 %2734
      %2738 = vset.pattern.permute.xlu0 0
      %2739 = vperm.xlu0 %2738, %v2045
      %v2740 = vpop.permute.xlu0 %2739
      %2743 = vset.pattern.permute.xlu0 0
      %2744 = vperm.xlu0 %2743, %v2046
      %v2745 = vpop.permute.xlu0 %2744
      %2748 = vset.pattern.permute.xlu0 0
      %2749 = vperm.xlu0 %2748, %v2047
      %v2750 = vpop.permute.xlu0 %2749
      %2753 = vset.pattern.permute.xlu0 0
      %2754 = vperm.xlu0 %2753, %v2048
      %v2755 = vpop.permute.xlu0 %2754
      %2758 = vset.pattern.permute.xlu0 0
      %2759 = vperm.xlu0 %2758, %v2049
      %v2760 = vpop.permute.xlu0 %2759
      %2763 = vset.pattern.permute.xlu0 0
      %2764 = vperm.xlu0 %2763, %v2050
      %v2765 = vpop.permute.xlu0 %2764
      %2768 = vset.pattern.permute.xlu0 0
      %2769 = vperm.xlu0 %2768, %v2051
      %v2770 = vpop.permute.xlu0 %2769
      %2773 = vset.pattern.permute.xlu0 0
      %2774 = vperm.xlu0 %2773, %v2052
      %v2775 = vpop.permute.xlu0 %2774
      %2778 = vset.pattern.permute.xlu0 0
      %2779 = vperm.xlu0 %2778, %v2053
      %v2780 = vpop.permute.xlu0 %2779
      %2783 = vset.pattern.permute.xlu0 0
      %2784 = vperm.xlu0 %2783, %v2054
      %v2785 = vpop.permute.xlu0 %2784
      %2788 = vset.pattern.permute.xlu0 0
      %2789 = vperm.xlu0 %2788, %v2055
      %v2790 = vpop.permute.xlu0 %2789
      %2793 = vset.pattern.permute.xlu0 0
      %2794 = vperm.xlu0 %2793, %v2056
      %v2795 = vpop.permute.xlu0 %2794
      %2798 = vset.pattern.permute.xlu0 0
      %2799 = vperm.xlu0 %2798, %v2057
      %v2800 = vpop.permute.xlu0 %2799
      %2803 = vset.pattern.permute.xlu0 0
      %2804 = vperm.xlu0 %2803, %v2058
      %v2805 = vpop.permute.xlu0 %2804
      %2808 = vset.pattern.permute.xlu0 0
      %2809 = vperm.xlu0 %2808, %v2059
      %v2810 = vpop.permute.xlu0 %2809
      %2813 = vset.pattern.permute.xlu0 0
      %2814 = vperm.xlu0 %2813, %v2060
      %v2815 = vpop.permute.xlu0 %2814
      %2818 = vset.pattern.permute.xlu0 0
      %2819 = vperm.xlu0 %2818, %v2061
      %v2820 = vpop.permute.xlu0 %2819
      %2823 = vset.pattern.permute.xlu0 0
      %2824 = vperm.xlu0 %2823, %v2062
      %v2825 = vpop.permute.xlu0 %2824
      %2828 = vset.pattern.permute.xlu0 0
      %2829 = vperm.xlu0 %2828, %v2063
      %v2830 = vpop.permute.xlu0 %2829
      %v2832 = vadd.f32 %v2384, %v2515
      %v2833 = vadd.f32 %v2385, %v2515
      %v2834 = vadd.f32 %v2386, %v2520
      %v2835 = vadd.f32 %v2387, %v2520
      %v2836 = vadd.f32 %v2388, %v2525
      %v2837 = vadd.f32 %v2389, %v2525
      %v2838 = vadd.f32 %v2390, %v2530
      %v2839 = vadd.f32 %v2391, %v2530
      %v2840 = vadd.f32 %v2392, %v2535
      %v2841 = vadd.f32 %v2393, %v2535
      %v2842 = vadd.f32 %v2394, %v2540
      %v2843 = vadd.f32 %v2395, %v2540
      %v2844 = vadd.f32 %v2396, %v2545
      %v2845 = vadd.f32 %v2397, %v2545
      %v2846 = vadd.f32 %v2398, %v2550
      %v2847 = vadd.f32 %v2399, %v2550
      %v2848 = vadd.f32 %v2400, %v2555
      %v2849 = vadd.f32 %v2401, %v2555
      %v2850 = vadd.f32 %v2402, %v2560
      %v2851 = vadd.f32 %v2403, %v2560
      %v2852 = vadd.f32 %v2404, %v2565
      %v2853 = vadd.f32 %v2405, %v2565
      %v2854 = vadd.f32 %v2406, %v2570
      %v2855 = vadd.f32 %v2407, %v2570
      %v2856 = vadd.f32 %v2408, %v2575
      %v2857 = vadd.f32 %v2409, %v2575
      %v2858 = vadd.f32 %v2410, %v2580
      %v2859 = vadd.f32 %v2411, %v2580
      %v2860 = vadd.f32 %v2412, %v2585
      %v2861 = vadd.f32 %v2413, %v2585
      %v2862 = vadd.f32 %v2414, %v2590
      %v2863 = vadd.f32 %v2415, %v2590
      %v2864 = vadd.f32 %v2416, %v2595
      %v2865 = vadd.f32 %v2417, %v2595
      %v2866 = vadd.f32 %v2418, %v2600
      %v2867 = vadd.f32 %v2419, %v2600
      %v2868 = vadd.f32 %v2420, %v2605
      %v2869 = vadd.f32 %v2421, %v2605
      %v2870 = vadd.f32 %v2422, %v2610
      %v2871 = vadd.f32 %v2423, %v2610
      %v2872 = vadd.f32 %v2424, %v2615
      %v2873 = vadd.f32 %v2425, %v2615
      %v2874 = vadd.f32 %v2426, %v2620
      %v2875 = vadd.f32 %v2427, %v2620
      %v2876 = vadd.f32 %v2428, %v2625
      %v2877 = vadd.f32 %v2429, %v2625
      %v2878 = vadd.f32 %v2430, %v2630
      %v2879 = vadd.f32 %v2431, %v2630
      %v2880 = vadd.f32 %v2432, %v2635
      %v2881 = vadd.f32 %v2433, %v2635
      %v2882 = vadd.f32 %v2434, %v2640
      %v2883 = vadd.f32 %v2435, %v2640
      %v2884 = vadd.f32 %v2436, %v2645
      %v2885 = vadd.f32 %v2437, %v2645
      %v2886 = vadd.f32 %v2438, %v2650
      %v2887 = vadd.f32 %v2439, %v2650
      %v2888 = vadd.f32 %v2440, %v2655
      %v2889 = vadd.f32 %v2441, %v2655
      %v2890 = vadd.f32 %v2442, %v2660
      %v2891 = vadd.f32 %v2443, %v2660
      %v2892 = vadd.f32 %v2444, %v2665
      %v2893 = vadd.f32 %v2445, %v2665
      %v2894 = vadd.f32 %v2446, %v2670
      %v2895 = vadd.f32 %v2447, %v2670
      %v2896 = vadd.f32 %v2448, %v2675
      %v2897 = vadd.f32 %v2449, %v2675
      %v2898 = vadd.f32 %v2450, %v2680
      %v2899 = vadd.f32 %v2451, %v2680
      %v2900 = vadd.f32 %v2452, %v2685
      %v2901 = vadd.f32 %v2453, %v2685
      %v2902 = vadd.f32 %v2454, %v2690
      %v2903 = vadd.f32 %v2455, %v2690
      %v2904 = vadd.f32 %v2456, %v2695
      %v2905 = vadd.f32 %v2457, %v2695
      %v2906 = vadd.f32 %v2458, %v2700
      %v2907 = vadd.f32 %v2459, %v2700
      %v2908 = vadd.f32 %v2460, %v2705
      %v2909 = vadd.f32 %v2461, %v2705
      %v2910 = vadd.f32 %v2462, %v2710
      %v2911 = vadd.f32 %v2463, %v2710
      %v2912 = vadd.f32 %v2464, %v2715
      %v2913 = vadd.f32 %v2465, %v2715
      %v2914 = vadd.f32 %v2466, %v2720
      %v2915 = vadd.f32 %v2467, %v2720
      %v2916 = vadd.f32 %v2468, %v2725
      %v2917 = vadd.f32 %v2469, %v2725
      %v2918 = vadd.f32 %v2470, %v2730
      %v2919 = vadd.f32 %v2471, %v2730
      %v2920 = vadd.f32 %v2472, %v2735
      %v2921 = vadd.f32 %v2473, %v2735
      %v2922 = vadd.f32 %v2474, %v2740
      %v2923 = vadd.f32 %v2475, %v2740
      %v2924 = vadd.f32 %v2476, %v2745
      %v2925 = vadd.f32 %v2477, %v2745
      %v2926 = vadd.f32 %v2478, %v2750
      %v2927 = vadd.f32 %v2479, %v2750
      %v2928 = vadd.f32 %v2480, %v2755
      %v2929 = vadd.f32 %v2481, %v2755
      %v2930 = vadd.f32 %v2482, %v2760
      %v2931 = vadd.f32 %v2483, %v2760
      %v2932 = vadd.f32 %v2484, %v2765
      %v2933 = vadd.f32 %v2485, %v2765
      %v2934 = vadd.f32 %v2486, %v2770
      %v2935 = vadd.f32 %v2487, %v2770
      %v2936 = vadd.f32 %v2488, %v2775
      %v2937 = vadd.f32 %v2489, %v2775
      %v2938 = vadd.f32 %v2490, %v2780
      %v2939 = vadd.f32 %v2491, %v2780
      %v2940 = vadd.f32 %v2492, %v2785
      %v2941 = vadd.f32 %v2493, %v2785
      %v2942 = vadd.f32 %v2494, %v2790
      %v2943 = vadd.f32 %v2495, %v2790
      %v2944 = vadd.f32 %v2496, %v2795
      %v2945 = vadd.f32 %v2497, %v2795
      %v2946 = vadd.f32 %v2498, %v2800
      %v2947 = vadd.f32 %v2499, %v2800
      %v2948 = vadd.f32 %v2500, %v2805
      %v2949 = vadd.f32 %v2501, %v2805
      %v2950 = vadd.f32 %v2502, %v2810
      %v2951 = vadd.f32 %v2503, %v2810
      %v2952 = vadd.f32 %v2504, %v2815
      %v2953 = vadd.f32 %v2505, %v2815
      %v2954 = vadd.f32 %v2506, %v2820
      %v2955 = vadd.f32 %v2507, %v2820
      %v2956 = vadd.f32 %v2508, %v2825
      %v2957 = vadd.f32 %v2509, %v2825
      %v2958 = vadd.f32 %v2510, %v2830
      %v2959 = vadd.f32 %v2511, %v2830
      %v2960 = vadd.f32 %v2832, %v354
      %v2961 = vadd.f32 %v2833, %v355
      %v2962 = vadd.f32 %v2834, %v356
      %v2963 = vadd.f32 %v2835, %v357
      %v2964 = vadd.f32 %v2836, %v358
      %v2965 = vadd.f32 %v2837, %v359
      %v2966 = vadd.f32 %v2838, %v360
      %v2967 = vadd.f32 %v2839, %v361
      %v2968 = vadd.f32 %v2840, %v362
      %v2969 = vadd.f32 %v2841, %v363
      %v2970 = vadd.f32 %v2842, %v364
      %v2971 = vadd.f32 %v2843, %v365
      %v2972 = vadd.f32 %v2844, %v366
      %v2973 = vadd.f32 %v2845, %v367
      %v2974 = vadd.f32 %v2846, %v368
      %v2975 = vadd.f32 %v2847, %v369
      %v2976 = vadd.f32 %v2848, %v370
      %v2977 = vadd.f32 %v2849, %v371
      %v2978 = vadd.f32 %v2850, %v372
      %v2979 = vadd.f32 %v2851, %v373
      %v2980 = vadd.f32 %v2852, %v374
      %v2981 = vadd.f32 %v2853, %v375
      %v2982 = vadd.f32 %v2854, %v376
      %v2983 = vadd.f32 %v2855, %v377
      %v2984 = vadd.f32 %v2856, %v378
      %v2985 = vadd.f32 %v2857, %v379
      %v2986 = vadd.f32 %v2858, %v380
      %v2987 = vadd.f32 %v2859, %v381
      %v2988 = vadd.f32 %v2860, %v382
      %v2989 = vadd.f32 %v2861, %v383
      %v2990 = vadd.f32 %v2862, %v384
      %v2991 = vadd.f32 %v2863, %v385
      %v2992 = vadd.f32 %v2864, %v386
      %v2993 = vadd.f32 %v2865, %v387
      %v2994 = vadd.f32 %v2866, %v388
      %v2995 = vadd.f32 %v2867, %v389
      %v2996 = vadd.f32 %v2868, %v390
      %v2997 = vadd.f32 %v2869, %v391
      %v2998 = vadd.f32 %v2870, %v392
      %v2999 = vadd.f32 %v2871, %v393
      %v3000 = vadd.f32 %v2872, %v394
      %v3001 = vadd.f32 %v2873, %v395
      %v3002 = vadd.f32 %v2874, %v396
      %v3003 = vadd.f32 %v2875, %v397
      %v3004 = vadd.f32 %v2876, %v398
      %v3005 = vadd.f32 %v2877, %v399
      %v3006 = vadd.f32 %v2878, %v400
      %v3007 = vadd.f32 %v2879, %v401
      %v3008 = vadd.f32 %v2880, %v402
      %v3009 = vadd.f32 %v2881, %v403
      %v3010 = vadd.f32 %v2882, %v404
      %v3011 = vadd.f32 %v2883, %v405
      %v3012 = vadd.f32 %v2884, %v406
      %v3013 = vadd.f32 %v2885, %v407
      %v3014 = vadd.f32 %v2886, %v408
      %v3015 = vadd.f32 %v2887, %v409
      %v3016 = vadd.f32 %v2888, %v410
      %v3017 = vadd.f32 %v2889, %v411
      %v3018 = vadd.f32 %v2890, %v412
      %v3019 = vadd.f32 %v2891, %v413
      %v3020 = vadd.f32 %v2892, %v414
      %v3021 = vadd.f32 %v2893, %v415
      %v3022 = vadd.f32 %v2894, %v416
      %v3023 = vadd.f32 %v2895, %v417
      %v3024 = vadd.f32 %v2896, %v418
      %v3025 = vadd.f32 %v2897, %v419
      %v3026 = vadd.f32 %v2898, %v420
      %v3027 = vadd.f32 %v2899, %v421
      %v3028 = vadd.f32 %v2900, %v422
      %v3029 = vadd.f32 %v2901, %v423
      %v3030 = vadd.f32 %v2902, %v424
      %v3031 = vadd.f32 %v2903, %v425
      %v3032 = vadd.f32 %v2904, %v426
      %v3033 = vadd.f32 %v2905, %v427
      %v3034 = vadd.f32 %v2906, %v428
      %v3035 = vadd.f32 %v2907, %v429
      %v3036 = vadd.f32 %v2908, %v430
      %v3037 = vadd.f32 %v2909, %v431
      %v3038 = vadd.f32 %v2910, %v432
      %v3039 = vadd.f32 %v2911, %v433
      %v3040 = vadd.f32 %v2912, %v434
      %v3041 = vadd.f32 %v2913, %v435
      %v3042 = vadd.f32 %v2914, %v436
      %v3043 = vadd.f32 %v2915, %v437
      %v3044 = vadd.f32 %v2916, %v438
      %v3045 = vadd.f32 %v2917, %v439
      %v3046 = vadd.f32 %v2918, %v440
      %v3047 = vadd.f32 %v2919, %v441
      %v3048 = vadd.f32 %v2920, %v442
      %v3049 = vadd.f32 %v2921, %v443
      %v3050 = vadd.f32 %v2922, %v444
      %v3051 = vadd.f32 %v2923, %v445
      %v3052 = vadd.f32 %v2924, %v446
      %v3053 = vadd.f32 %v2925, %v447
      %v3054 = vadd.f32 %v2926, %v448
      %v3055 = vadd.f32 %v2927, %v449
      %v3056 = vadd.f32 %v2928, %v450
      %v3057 = vadd.f32 %v2929, %v451
      %v3058 = vadd.f32 %v2930, %v452
      %v3059 = vadd.f32 %v2931, %v453
      %v3060 = vadd.f32 %v2932, %v454
      %v3061 = vadd.f32 %v2933, %v455
      %v3062 = vadd.f32 %v2934, %v456
      %v3063 = vadd.f32 %v2935, %v457
      %v3064 = vadd.f32 %v2936, %v458
      %v3065 = vadd.f32 %v2937, %v459
      %v3066 = vadd.f32 %v2938, %v460
      %v3067 = vadd.f32 %v2939, %v461
      %v3068 = vadd.f32 %v2940, %v462
      %v3069 = vadd.f32 %v2941, %v463
      %v3070 = vadd.f32 %v2942, %v464
      %v3071 = vadd.f32 %v2943, %v465
      %v3072 = vadd.f32 %v2944, %v466
      %v3073 = vadd.f32 %v2945, %v467
      %v3074 = vadd.f32 %v2946, %v468
      %v3075 = vadd.f32 %v2947, %v469
      %v3076 = vadd.f32 %v2948, %v470
      %v3077 = vadd.f32 %v2949, %v471
      %v3078 = vadd.f32 %v2950, %v472
      %v3079 = vadd.f32 %v2951, %v473
      %v3080 = vadd.f32 %v2952, %v474
      %v3081 = vadd.f32 %v2953, %v475
      %v3082 = vadd.f32 %v2954, %v476
      %v3083 = vadd.f32 %v2955, %v477
      %v3084 = vadd.f32 %v2956, %v478
      %v3085 = vadd.f32 %v2957, %v479
      %v3086 = vadd.f32 %v2958, %v480
      %v3087 = vadd.f32 %v2959, %v481
      %3088 = vst [vmem:[%s224] sm:$0xff] %v2960
      %3089 = vst.msk [vmem:[%s224 + $0x8] sm:$0xff] %vm482, %v2961
      %3090 = vst [vmem:[%s224 + $0x10] sm:$0xff] %v2962
      %3091 = vst.msk [vmem:[%s224 + $0x18] sm:$0xff] %vm482, %v2963
      %3092 = vst [vmem:[%s224 + $0x20] sm:$0xff] %v2964
      %3093 = vst.msk [vmem:[%s224 + $0x28] sm:$0xff] %vm482, %v2965
      %3094 = vst [vmem:[%s224 + $0x30] sm:$0xff] %v2966
      %3095 = vst.msk [vmem:[%s224 + $0x38] sm:$0xff] %vm482, %v2967
      %3096 = vst [vmem:[%s224 + $0x40] sm:$0xff] %v2968
      %3097 = vst.msk [vmem:[%s224 + $0x48] sm:$0xff] %vm482, %v2969
      %3098 = vst [vmem:[%s224 + $0x50] sm:$0xff] %v2970
      %3099 = vst.msk [vmem:[%s224 + $0x58] sm:$0xff] %vm482, %v2971
      %3100 = vst [vmem:[%s224 + $0x60] sm:$0xff] %v2972
      %3101 = vst.msk [vmem:[%s224 + $0x68] sm:$0xff] %vm482, %v2973
      %3102 = vst [vmem:[%s224 + $0x70] sm:$0xff] %v2974
      %3103 = vst.msk [vmem:[%s224 + $0x78] sm:$0xff] %vm482, %v2975
      %3104 = vst [vmem:[%s224 + $0x80] sm:$0xff] %v2976
      %3105 = vst.msk [vmem:[%s224 + $0x88] sm:$0xff] %vm482, %v2977
      %3106 = vst [vmem:[%s224 + $0x90] sm:$0xff] %v2978
      %3107 = vst.msk [vmem:[%s224 + $0x98] sm:$0xff] %vm482, %v2979
      %3108 = vst [vmem:[%s224 + $0xa0] sm:$0xff] %v2980
      %3109 = vst.msk [vmem:[%s224 + $0xa8] sm:$0xff] %vm482, %v2981
      %3110 = vst [vmem:[%s224 + $0xb0] sm:$0xff] %v2982
      %3111 = vst.msk [vmem:[%s224 + $0xb8] sm:$0xff] %vm482, %v2983
      %3112 = vst [vmem:[%s224 + $0xc0] sm:$0xff] %v2984
      %3113 = vst.msk [vmem:[%s224 + $0xc8] sm:$0xff] %vm482, %v2985
      %3114 = vst [vmem:[%s224 + $0xd0] sm:$0xff] %v2986
      %3115 = vst.msk [vmem:[%s224 + $0xd8] sm:$0xff] %vm482, %v2987
      %3116 = vst [vmem:[%s224 + $0xe0] sm:$0xff] %v2988
      %3117 = vst.msk [vmem:[%s224 + $0xe8] sm:$0xff] %vm482, %v2989
      %3118 = vst [vmem:[%s224 + $0xf0] sm:$0xff] %v2990
      %3119 = vst.msk [vmem:[%s224 + $0xf8] sm:$0xff] %vm482, %v2991
      %3120 = vst [vmem:[%s224 + $0x100] sm:$0xff] %v2992
      %3121 = vst.msk [vmem:[%s224 + $0x108] sm:$0xff] %vm482, %v2993
      %3122 = vst [vmem:[%s224 + $0x110] sm:$0xff] %v2994
      %3123 = vst.msk [vmem:[%s224 + $0x118] sm:$0xff] %vm482, %v2995
      %3124 = vst [vmem:[%s224 + $0x120] sm:$0xff] %v2996
      %3125 = vst.msk [vmem:[%s224 + $0x128] sm:$0xff] %vm482, %v2997
      %3126 = vst [vmem:[%s224 + $0x130] sm:$0xff] %v2998
      %3127 = vst.msk [vmem:[%s224 + $0x138] sm:$0xff] %vm482, %v2999
      %3128 = vst [vmem:[%s224 + $0x140] sm:$0xff] %v3000
      %3129 = vst.msk [vmem:[%s224 + $0x148] sm:$0xff] %vm482, %v3001
      %3130 = vst [vmem:[%s224 + $0x150] sm:$0xff] %v3002
      %3131 = vst.msk [vmem:[%s224 + $0x158] sm:$0xff] %vm482, %v3003
      %3132 = vst [vmem:[%s224 + $0x160] sm:$0xff] %v3004
      %3133 = vst.msk [vmem:[%s224 + $0x168] sm:$0xff] %vm482, %v3005
      %3134 = vst [vmem:[%s224 + $0x170] sm:$0xff] %v3006
      %3135 = vst.msk [vmem:[%s224 + $0x178] sm:$0xff] %vm482, %v3007
      %3136 = vst [vmem:[%s224 + $0x180] sm:$0xff] %v3008
      %3137 = vst.msk [vmem:[%s224 + $0x188] sm:$0xff] %vm482, %v3009
      %3138 = vst [vmem:[%s224 + $0x190] sm:$0xff] %v3010
      %3139 = vst.msk [vmem:[%s224 + $0x198] sm:$0xff] %vm482, %v3011
      %3140 = vst [vmem:[%s224 + $0x1a0] sm:$0xff] %v3012
      %3141 = vst.msk [vmem:[%s224 + $0x1a8] sm:$0xff] %vm482, %v3013
      %3142 = vst [vmem:[%s224 + $0x1b0] sm:$0xff] %v3014
      %3143 = vst.msk [vmem:[%s224 + $0x1b8] sm:$0xff] %vm482, %v3015
      %3144 = vst [vmem:[%s224 + $0x1c0] sm:$0xff] %v3016
      %3145 = vst.msk [vmem:[%s224 + $0x1c8] sm:$0xff] %vm482, %v3017
      %3146 = vst [vmem:[%s224 + $0x1d0] sm:$0xff] %v3018
      %3147 = vst.msk [vmem:[%s224 + $0x1d8] sm:$0xff] %vm482, %v3019
      %3148 = vst [vmem:[%s224 + $0x1e0] sm:$0xff] %v3020
      %3149 = vst.msk [vmem:[%s224 + $0x1e8] sm:$0xff] %vm482, %v3021
      %3150 = vst [vmem:[%s224 + $0x1f0] sm:$0xff] %v3022
      %3151 = vst.msk [vmem:[%s224 + $0x1f8] sm:$0xff] %vm482, %v3023
      %3152 = vst [vmem:[%s224 + $0x200] sm:$0xff] %v3024
      %3153 = vst.msk [vmem:[%s224 + $0x208] sm:$0xff] %vm482, %v3025
      %3154 = vst [vmem:[%s224 + $0x210] sm:$0xff] %v3026
      %3155 = vst.msk [vmem:[%s224 + $0x218] sm:$0xff] %vm482, %v3027
      %3156 = vst [vmem:[%s224 + $0x220] sm:$0xff] %v3028
      %3157 = vst.msk [vmem:[%s224 + $0x228] sm:$0xff] %vm482, %v3029
      %3158 = vst [vmem:[%s224 + $0x230] sm:$0xff] %v3030
      %3159 = vst.msk [vmem:[%s224 + $0x238] sm:$0xff] %vm482, %v3031
      %3160 = vst [vmem:[%s224 + $0x240] sm:$0xff] %v3032
      %3161 = vst.msk [vmem:[%s224 + $0x248] sm:$0xff] %vm482, %v3033
      %3162 = vst [vmem:[%s224 + $0x250] sm:$0xff] %v3034
      %3163 = vst.msk [vmem:[%s224 + $0x258] sm:$0xff] %vm482, %v3035
      %3164 = vst [vmem:[%s224 + $0x260] sm:$0xff] %v3036
      %3165 = vst.msk [vmem:[%s224 + $0x268] sm:$0xff] %vm482, %v3037
      %3166 = vst [vmem:[%s224 + $0x270] sm:$0xff] %v3038
      %3167 = vst.msk [vmem:[%s224 + $0x278] sm:$0xff] %vm482, %v3039
      %3168 = vst [vmem:[%s224 + $0x280] sm:$0xff] %v3040
      %3169 = vst.msk [vmem:[%s224 + $0x288] sm:$0xff] %vm482, %v3041
      %3170 = vst [vmem:[%s224 + $0x290] sm:$0xff] %v3042
      %3171 = vst.msk [vmem:[%s224 + $0x298] sm:$0xff] %vm482, %v3043
      %3172 = vst [vmem:[%s224 + $0x2a0] sm:$0xff] %v3044
      %3173 = vst.msk [vmem:[%s224 + $0x2a8] sm:$0xff] %vm482, %v3045
      %3174 = vst [vmem:[%s224 + $0x2b0] sm:$0xff] %v3046
      %3175 = vst.msk [vmem:[%s224 + $0x2b8] sm:$0xff] %vm482, %v3047
      %3176 = vst [vmem:[%s224 + $0x2c0] sm:$0xff] %v3048
      %3177 = vst.msk [vmem:[%s224 + $0x2c8] sm:$0xff] %vm482, %v3049
      %3178 = vst [vmem:[%s224 + $0x2d0] sm:$0xff] %v3050
      %3179 = vst.msk [vmem:[%s224 + $0x2d8] sm:$0xff] %vm482, %v3051
      %3180 = vst [vmem:[%s224 + $0x2e0] sm:$0xff] %v3052
      %3181 = vst.msk [vmem:[%s224 + $0x2e8] sm:$0xff] %vm482, %v3053
      %3182 = vst [vmem:[%s224 + $0x2f0] sm:$0xff] %v3054
      %3183 = vst.msk [vmem:[%s224 + $0x2f8] sm:$0xff] %vm482, %v3055
      %3184 = vst [vmem:[%s224 + $0x300] sm:$0xff] %v3056
      %3185 = vst.msk [vmem:[%s224 + $0x308] sm:$0xff] %vm482, %v3057
      %3186 = vst [vmem:[%s224 + $0x310] sm:$0xff] %v3058
      %3187 = vst.msk [vmem:[%s224 + $0x318] sm:$0xff] %vm482, %v3059
      %3188 = vst [vmem:[%s224 + $0x320] sm:$0xff] %v3060
      %3189 = vst.msk [vmem:[%s224 + $0x328] sm:$0xff] %vm482, %v3061
      %3190 = vst [vmem:[%s224 + $0x330] sm:$0xff] %v3062
      %3191 = vst.msk [vmem:[%s224 + $0x338] sm:$0xff] %vm482, %v3063
      %3192 = vst [vmem:[%s224 + $0x340] sm:$0xff] %v3064
      %3193 = vst.msk [vmem:[%s224 + $0x348] sm:$0xff] %vm482, %v3065
      %3194 = vst [vmem:[%s224 + $0x350] sm:$0xff] %v3066
      %3195 = vst.msk [vmem:[%s224 + $0x358] sm:$0xff] %vm482, %v3067
      %3196 = vst [vmem:[%s224 + $0x360] sm:$0xff] %v3068
      %3197 = vst.msk [vmem:[%s224 + $0x368] sm:$0xff] %vm482, %v3069
      %3198 = vst [vmem:[%s224 + $0x370] sm:$0xff] %v3070
      %3199 = vst.msk [vmem:[%s224 + $0x378] sm:$0xff] %vm482, %v3071
      %3200 = vst [vmem:[%s224 + $0x380] sm:$0xff] %v3072
      %3201 = vst.msk [vmem:[%s224 + $0x388] sm:$0xff] %vm482, %v3073
      %3202 = vst [vmem:[%s224 + $0x390] sm:$0xff] %v3074
      %3203 = vst.msk [vmem:[%s224 + $0x398] sm:$0xff] %vm482, %v3075
      %3204 = vst [vmem:[%s224 + $0x3a0] sm:$0xff] %v3076
      %3205 = vst.msk [vmem:[%s224 + $0x3a8] sm:$0xff] %vm482, %v3077
      %3206 = vst [vmem:[%s224 + $0x3b0] sm:$0xff] %v3078
      %3207 = vst.msk [vmem:[%s224 + $0x3b8] sm:$0xff] %vm482, %v3079
      %3208 = vst [vmem:[%s224 + $0x3c0] sm:$0xff] %v3080
      %3209 = vst.msk [vmem:[%s224 + $0x3c8] sm:$0xff] %vm482, %v3081
      %3210 = vst [vmem:[%s224 + $0x3d0] sm:$0xff] %v3082
      %3211 = vst.msk [vmem:[%s224 + $0x3d8] sm:$0xff] %vm482, %v3083
      %3212 = vst [vmem:[%s224 + $0x3e0] sm:$0xff] %v3084
      %3213 = vst.msk [vmem:[%s224 + $0x3e8] sm:$0xff] %vm482, %v3085
      %3214 = vst [vmem:[%s224 + $0x3f0] sm:$0xff] %v3086
      %3215 = vst.msk [vmem:[%s224 + $0x3f8] sm:$0xff] %vm482, %v3087
      %s3216 = smul.u32 64, %s14
      %p3217 = scmp.lt.s32.totalorder %s3216, 127
      %s3218 = scalar_select %p3217, %s3216, 127
      %s3219 = smul.addr %s3218, 2
      %s3220 = smul.addr %s3219, 8
      %s3221 = scalar_lea.vmem %s3, %s3220
      // Predicated region
      $region33: #{tpu_custom_call.1} parent=31 // pred_check
        %p3222 = pneg %p110
      $region34: #{tpu_custom_call.1} parent=31 // pred_check_branch
        %3224 = sbr.rel (%p3222) target = $region36
      $region35: #{tpu_custom_call.1} parent=31 // pred_region
        %s3225 = smul.u32 64, %s14
      $region36: #{tpu_custom_call.1} parent=31 // pred_fallthru
        _
    $region32: #{tpu_custom_call.1} parent=5 // pred_fallthru
      _
    %p3226 = scmp.le.s32.totalorder 2, %s9
    // Predicated region
    $region37: #{tpu_custom_call.1} parent=5 // pred_check
      %p3227 = pneg %p3226
    $region38: #{tpu_custom_call.1} parent=5 // pred_check_branch
      %3229 = sbr.rel (%p3227) target = $region40
    $region39: #{tpu_custom_call.1} parent=5 // pred_region
      %s3230 = ssub.s32 %s9, 2
      // Predicated region
      $region41: #{tpu_custom_call.1} parent=39 // pred_check
        %p3231 = pneg %p116
      $region42: #{tpu_custom_call.1} parent=39 // pred_check_branch
        %3233 = sbr.rel (%p3231) target = $region44
      $region43: #{tpu_custom_call.1} parent=39 // pred_region
        %s3234 = smul.u32 64, %s15
        %p3235 = scmp.lt.s32.totalorder %s3234, 127
        %s3236 = scalar_select %p3235, %s3234, 127
        %s3237 = smul.addr %s3236, 2
        %s3238 = smul.addr %s3237, 8
        %s3239 = scalar_lea.vmem %s3, %s3238
      $region44: #{tpu_custom_call.1} parent=39 // pred_fallthru
        _
    $region40: #{tpu_custom_call.1} parent=5 // pred_fallthru
      _
  $region6: #{tpu_custom_call.1} parent=0 // loop_footer
    %s13 = sadd.s32 1, %s9
  $region7: #{tpu_custom_call.1} parent=0 // loop_footer_branch
    %8 = sbr.rel target = $region3
  $region8: #{tpu_custom_call.1} parent=0 // loop_exit
    _

</llo_original>
